<compile_context>
chip_gen: v7x
topology: tpu7x:2x2x1
jax: 0.10.0
libtpu: 0.0.40
codegen_flags: <defaults>
</compile_context>

<pallas_src>
import functools

import jax
import jax.numpy as jnp
import numpy as np
from jax import lax
from jax.experimental import pallas as pl
from jax.experimental.pallas import tpu as pltpu


def _fold_bn(gamma, beta, mean, var, eps=1e-5):
    scale = gamma / jnp.sqrt(var + eps)
    bias = beta - mean * scale
    return scale.astype(jnp.float32), bias.astype(jnp.float32)


def _round_up(v, m):
    return ((v + m - 1) // m) * m


def _inv_res_kernel(x_ref, w1_ref, b1_ref, wd_ref, b2_ref, masks_ref,
                    w3_ref, b3_ref, o_ref,
                    *, groups, n_cmask, use_res, mm_dtype):
    """One (C, NB*H*W) slab per grid step.  Channels on sublanes, spatial+batch
    on lanes, so both 1x1 convs are plain MXU matmuls and the store is an
    unmasked lane-dense vst."""
    x = x_ref[0]                                           # (Cin_p, L), mm_dtype

    # ---- 1x1 expand conv (BN scale folded into w1), bf16 MXU, f32 acc ----
    h = jnp.dot(w1_ref[...], x, preferred_element_type=jnp.float32)
    h = jnp.clip(h + b1_ref[...], 0.0, 6.0)                # (Chid_p, L) f32

    # ---- 3x3 depthwise conv via lane rolls + factored border masks ----
    # Column pre-masks (input frame): zero the input columns that only
    # wrapped readers of the dw!=0 taps ever see (also kills cross-image bleed
    # when several images share the lane axis).
    h_pre = [h * masks_ref[i:i + 1, :] for i in range(n_cmask)]

    acc = None
    for ridx, taps in groups:                              # 3 dh groups (static)
        g = None
        for cidx, t, shift in taps:                        # 3 dw taps (static)
            v = h if cidx is None else h_pre[cidx]
            if shift:
                v = pltpu.roll(v, shift, 1)                # XLU lane rotate
            term = v * wd_ref[:, t:t + 1]                  # per-channel weight
            g = term if g is None else g + term
        if ridx is not None:                               # row mask, output frame
            g = g * masks_ref[ridx:ridx + 1, :]
        acc = g if acc is None else acc + g
    d = jnp.clip(acc + b2_ref[...], 0.0, 6.0)              # (Chid_p, L) f32

    # ---- 1x1 project conv (BN scale folded into w3), bf16 MXU, f32 acc ----
    y = jnp.dot(w3_ref[...], d.astype(mm_dtype),
                preferred_element_type=jnp.float32)
    y = y + b3_ref[...]                                    # (Cout_p, L) f32

    if use_res:
        y = y + x.astype(jnp.float32)                      # re-read x; short live range

    o_ref[0] = y.astype(o_ref.dtype)


def inverted_residuals_block(x_nchw, params, *, stride, expand_ratio, dilation=1,
                             mm_dtype=jnp.bfloat16, images_per_step=None):
    """Forward pass of InvertedResidualsBlock. x_nchw: (N, Cin, H, W) float32."""
    N, Cin, H, W = x_nchw.shape
    Chid = Cin * expand_ratio
    Cout = params["w3"].shape[0]                   # torch layout (Cout, Chid, 1, 1)
    padding = (2 - stride) if dilation == 1 else dilation
    assert padding >= 0, "module implies stride in {1, 2} when dilation == 1"
    use_res = (stride == 1) and (Cin == Cout)
    HW = H * W
    Ho = (H + 2 * padding - dilation * 2 - 1) // stride + 1
    Wo = (W + 2 * padding - dilation * 2 - 1) // stride + 1

    # Channel padding to the sublane tile (unmasked loads/stores, aligned MXU rows).
    c_tile = 16 if mm_dtype == jnp.bfloat16 else 8
    Cin_p = _round_up(Cin, c_tile)
    Cout_p = _round_up(Cout, c_tile)
    Chid_p = _round_up(Chid, 8)        # depthwise stage is f32; keep its sublanes minimal

    # Images folded into the lane axis per grid step (>=2 grid blocks when N allows,
    # so v7x's second TensorCore stays busy).
    if images_per_step is None:
        nb = 1
        for cand in range(1, N + 1):
            if N % cand:
                continue
            if cand * HW <= 512 and (N // cand) >= min(2, N):
                nb = cand
        images_per_step = nb
    NB = images_per_step
    assert N % NB == 0
    G = N // NB
    L = NB * HW

    # Fold BN scales into the conv weights; only per-channel biases stay in-kernel.
    s1, b1 = _fold_bn(*params["bn1"])
    s2, b2 = _fold_bn(*params["bn2"])
    s3, b3 = _fold_bn(*params["bn3"])
    w1 = params["w1"][:, :, 0, 0] * s1[:, None]                       # (Chid, Cin)
    wd = params["wd"][:, 0].reshape(Chid, 9) * s2[:, None]            # (Chid, 9) taps kh*3+kw
    w3 = params["w3"][:, :, 0, 0] * s3[:, None]                       # (Cout, Chid)
    w1 = jnp.pad(w1, ((0, Chid_p - Chid), (0, Cin_p - Cin))).astype(mm_dtype)
    wd = jnp.pad(wd, ((0, Chid_p - Chid), (0, 0))).astype(jnp.float32)
    w3 = jnp.pad(w3, ((0, Cout_p - Cout), (0, Chid_p - Chid))).astype(mm_dtype)
    b1 = jnp.pad(b1, (0, Chid_p - Chid)).reshape(Chid_p, 1)
    b2 = jnp.pad(b2, (0, Chid_p - Chid)).reshape(Chid_p, 1)
    b3 = jnp.pad(b3, (0, Cout_p - Cout)).reshape(Cout_p, 1)

    # NCHW -> (G, Cin_p, NB*HW): channels on sublanes, batch+spatial on lanes.
    x = x_nchw.reshape(N, Cin, HW).astype(jnp.float32)
    x = jnp.pad(x, ((0, 0), (0, Cin_p - Cin), (0, 0)))
    if NB > 1:
        x = x.reshape(G, NB, Cin_p, HW).transpose(0, 2, 1, 3)
    x = x.reshape(G, Cin_p, L).astype(mm_dtype)

    # Static factored border masks (host-side) and per-tap roll schedule.
    dhs = [kh * dilation - padding for kh in range(3)]
    dws = [kw * dilation - padding for kw in range(3)]
    nz_dw = sorted(d for d in set(dws) if d != 0)
    nz_dh = sorted(d for d in set(dhs) if d != 0)
    n_cmask = len(nz_dw)
    rr = np.arange(H)
    cc = np.arange(W)
    mask_np = np.zeros((n_cmask + len(nz_dh), HW), np.float32)
    for i, dw in enumerate(nz_dw):
        # input-frame column mask: keep input column ci only if its reader
        # (output column ci - dw) actually exists inside the image.
        ok = (cc - dw >= 0) & (cc - dw < W)
        mask_np[i] = np.tile(ok.astype(np.float32)[None, :], (H, 1)).reshape(HW)
    for i, dh in enumerate(nz_dh):
        # output-frame row mask: zero output rows whose dh-neighbour row is OOB.
        ok = (rr + dh >= 0) & (rr + dh < H)
        mask_np[n_cmask + i] = np.repeat(ok.astype(np.float32), W)
    masks = jnp.asarray(np.tile(mask_np, (1, NB)))                    # (n_masks, L)

    groups = []
    for kh in range(3):
        dh = dhs[kh]
        ridx = None if dh == 0 else n_cmask + nz_dh.index(dh)
        taps = []
        for kw in range(3):
            dw = dws[kw]
            cidx = None if dw == 0 else nz_dw.index(dw)
            shift = (-(dh * W + dw)) % L
            taps.append((cidx, kh * 3 + kw, shift))
        groups.append((ridx, tuple(taps)))
    groups = tuple(groups)

    kernel = functools.partial(
        _inv_res_kernel, groups=groups, n_cmask=n_cmask,
        use_res=use_res, mm_dtype=mm_dtype)

    out = pl.pallas_call(
        kernel,
        out_shape=jax.ShapeDtypeStruct((G, Cout_p, L), jnp.float32),
        grid_spec=pltpu.PrefetchScalarGridSpec(
            num_scalar_prefetch=0,
            grid=(G,),
            in_specs=[
                pl.BlockSpec((1, Cin_p, L), lambda g: (g, 0, 0)),
                pl.BlockSpec((Chid_p, Cin_p), lambda g: (0, 0)),
                pl.BlockSpec((Chid_p, 1), lambda g: (0, 0)),
                pl.BlockSpec((Chid_p, 9), lambda g: (0, 0)),
                pl.BlockSpec((Chid_p, 1), lambda g: (0, 0)),
                pl.BlockSpec(masks.shape, lambda g: (0, 0)),
                pl.BlockSpec((Cout_p, Chid_p), lambda g: (0, 0)),
                pl.BlockSpec((Cout_p, 1), lambda g: (0, 0)),
            ],
            out_specs=pl.BlockSpec((1, Cout_p, L), lambda g: (g, 0, 0)),
        ),
        compiler_params=pltpu.CompilerParams(
            dimension_semantics=("parallel",),        # batch blocks shard across TCs
            vmem_limit_bytes=48 * 1024 * 1024),
    )(x, w1, b1, wd, b2, masks, w3, b3)

    # Un-fold the lane axis back to (N, Cout, H, W).
    if NB > 1:
        out = out.reshape(G, Cout_p, NB, HW).transpose(0, 2, 1, 3)
    out = out.reshape(N, Cout_p, HW)[:, :Cout].reshape(N, Cout, H, W)
    if stride != 1:
        # Kernel computes the stride-1 grid; subsample once here.
        out = out[:, :, :(Ho - 1) * stride + 1:stride,
                  :(Wo - 1) * stride + 1:stride]
    return out


def _reference(x_nchw, params, *, stride, expand_ratio, dilation=1,
               mm_dtype=jnp.float32):
    """Pure-JAX (XLA conv) reference.  With mm_dtype=bf16 it quantizes at the
    same points as the kernel, so the comparison isolates kernel bugs from
    expected bf16 rounding."""
    N, Cin, H, W = x_nchw.shape
    Chid = Cin * expand_ratio
    Cout = params["w3"].shape[0]
    padding = (2 - stride) if dilation == 1 else dilation
    use_res = (stride == 1) and (Cin == Cout)

    s1, b1 = _fold_bn(*params["bn1"])
    s2, b2 = _fold_bn(*params["bn2"])
    s3, b3 = _fold_bn(*params["bn3"])
    w1 = (params["w1"][:, :, 0, 0] * s1[:, None]).astype(mm_dtype)    # (Chid, Cin)
    wd = params["wd"][:, 0] * s2[:, None, None]                       # (Chid, 3, 3) f32
    w3 = (params["w3"][:, :, 0, 0] * s3[:, None]).astype(mm_dtype)    # (Cout, Chid)
    wd_hwio = jnp.transpose(wd, (1, 2, 0)).reshape(3, 3, 1, Chid)

    x = jnp.transpose(x_nchw, (0, 2, 3, 1)).astype(mm_dtype)          # NHWC
    h = jnp.einsum("nhwc,oc->nhwo", x, w1,
                   preferred_element_type=jnp.float32) + b1
    h = jnp.clip(h, 0.0, 6.0)
    d = lax.conv_general_dilated(
        h, wd_hwio, window_strides=(stride, stride),
        padding=[(padding, padding), (padding, padding)],
        rhs_dilation=(dilation, dilation),
        dimension_numbers=("NHWC", "HWIO", "NHWC"),
        feature_group_count=Chid)
    d = jnp.clip(d + b2, 0.0, 6.0)
    y = jnp.einsum("nhwc,oc->nhwo", d.astype(mm_dtype), w3,
                   preferred_element_type=jnp.float32) + b3
    if use_res:
        y = y + x.astype(jnp.float32)
    return jnp.transpose(y, (0, 3, 1, 2))


def _make_params(key, inp, oup, expand_ratio):
    hid = inp * expand_ratio
    ks = jax.random.split(key, 16)

    def bn(kg, kb, km, kv, c):
        gamma = 0.5 + jax.random.uniform(kg, (c,), jnp.float32)
        beta = 0.1 * jax.random.normal(kb, (c,), jnp.float32)
        mean = 0.1 * jax.random.normal(km, (c,), jnp.float32)
        var = 0.5 + jax.random.uniform(kv, (c,), jnp.float32)
        return (gamma, beta, mean, var)

    return {
        # torch conv weight layouts
        "w1": 0.2 * jax.random.normal(ks[0], (hid, inp, 1, 1), jnp.float32),
        "wd": 0.2 * jax.random.normal(ks[1], (hid, 1, 3, 3), jnp.float32),
        "w3": 0.2 * jax.random.normal(ks[2], (oup, hid, 1, 1), jnp.float32),
        "bn1": bn(ks[3], ks[4], ks[5], ks[6], hid),
        "bn2": bn(ks[7], ks[8], ks[9], ks[10], hid),
        "bn3": bn(ks[11], ks[12], ks[13], ks[14], oup),
    }


if __name__ == "__main__":
    configs = [
        # (N, inp, H, W, oup, stride, expand_ratio, dilation)
        (4, 4, 16, 16, 4, 1, 6, 1),   # residual path; 2 images folded per grid step
        (2, 4, 16, 16, 8, 2, 6, 1),   # stride-2 path (no residual)
        (2, 4, 16, 16, 4, 1, 4, 2),   # dilation-2 path (residual)
    ]
    key = jax.random.PRNGKey(0)

    # f32 MXU path: tight check of layout / roll / factored-mask / stride logic.
    for idx, (N, inp, H, W, oup, stride, er, dil) in enumerate(configs):
        key, kx, kp = jax.random.split(key, 3)
        x = jax.random.normal(kx, (N, inp, H, W), jnp.float32)
        params = _make_params(kp, inp, oup, er)

        out = inverted_residuals_block(x, params, stride=stride, expand_ratio=er,
                                       dilation=dil, mm_dtype=jnp.float32)
        out = jax.block_until_ready(out)
        ref = _reference(x, params, stride=stride, expand_ratio=er, dilation=dil,
                         mm_dtype=jnp.float32)
        ref = jax.block_until_ready(ref)
        assert out.shape == ref.shape, (idx, out.shape, ref.shape)
        max_err = float(jnp.max(jnp.abs(out - ref)))
        assert max_err < 1e-3, f"config {idx}: f32 mismatch, max_err={max_err}"

    # bf16 MXU path (the optimized default): compare against the reference that
    # quantizes at the same points; any difference is bf16 rounding only.
    N, inp, H, W, oup, stride, er, dil = configs[0]
    key, kx, kp = jax.random.split(key, 3)
    x = jax.random.normal(kx, (N, inp, H, W), jnp.float32)
    params = _make_params(kp, inp, oup, er)
    out = inverted_residuals_block(x, params, stride=stride, expand_ratio=er,
                                   dilation=dil, mm_dtype=jnp.bfloat16)
    out = jax.block_until_ready(out)
    ref = _reference(x, params, stride=stride, expand_ratio=er, dilation=dil,
                     mm_dtype=jnp.bfloat16)
    ref = jax.block_until_ready(ref)
    assert out.shape == ref.shape, (out.shape, ref.shape)
    max_err = float(jnp.max(jnp.abs(out - ref)))
    assert max_err < 5e-2, f"bf16 mismatch vs matched reference: max_err={max_err}"

    print("KERNEL_OK")
</pallas_src>

<mosaic_0001>
module attributes {stable_mosaic.version = 11 : i64} {
  func.func @_inv_res_kernel(%arg0: i32, %arg1: memref<1x8x512xf32, #tpu.memory_space<vmem>>, %arg2: memref<24x8xf32, #tpu.memory_space<vmem>>, %arg3: memref<24x1xf32, #tpu.memory_space<vmem>>, %arg4: memref<24x9xf32, #tpu.memory_space<vmem>>, %arg5: memref<24x1xf32, #tpu.memory_space<vmem>>, %arg6: memref<4x512xf32, #tpu.memory_space<vmem>>, %arg7: memref<8x24xf32, #tpu.memory_space<vmem>>, %arg8: memref<8x1xf32, #tpu.memory_space<vmem>>, %arg9: memref<1x8x512xf32, #tpu.memory_space<vmem>>) attributes {dimension_semantics = [#tpu.dimension_semantics<parallel>], iteration_bounds = array<i64: 2>, scalar_prefetch = 0 : i64, scratch_operands = 0 : i64, tpu.core_type = #tpu.core_type<tc>, window_params = [{transform_indices = @transform_0, window_bounds = array<i64: 1, 8, 512>}, {pipeline_mode = #tpu.pipeline_mode<synchronous>, transform_indices = @transform_1, window_bounds = array<i64: 24, 8>}, {pipeline_mode = #tpu.pipeline_mode<synchronous>, transform_indices = @transform_2, window_bounds = array<i64: 24, 1>}, {pipeline_mode = #tpu.pipeline_mode<synchronous>, transform_indices = @transform_3, window_bounds = array<i64: 24, 9>}, {pipeline_mode = #tpu.pipeline_mode<synchronous>, transform_indices = @transform_4, window_bounds = array<i64: 24, 1>}, {pipeline_mode = #tpu.pipeline_mode<synchronous>, transform_indices = @transform_5, window_bounds = array<i64: 4, 512>}, {pipeline_mode = #tpu.pipeline_mode<synchronous>, transform_indices = @transform_6, window_bounds = array<i64: 8, 24>}, {pipeline_mode = #tpu.pipeline_mode<synchronous>, transform_indices = @transform_7, window_bounds = array<i64: 8, 1>}, {transform_indices = @transform_8, window_bounds = array<i64: 1, 8, 512>}]} {
    %c0 = arith.constant 0 : index
    %c0_0 = arith.constant 0 : index
    %c0_1 = arith.constant 0 : index
    %0 = vector.load %arg1[%c0, %c0_0, %c0_1] : memref<1x8x512xf32, #tpu.memory_space<vmem>>, vector<1x8x512xf32>
    %1 = vector.shape_cast %0 : vector<1x8x512xf32> to vector<8x512xf32>
    %c0_2 = arith.constant 0 : index
    %c0_3 = arith.constant 0 : index
    %2 = vector.load %arg2[%c0_2, %c0_3] : memref<24x8xf32, #tpu.memory_space<vmem>>, vector<24x8xf32>
    %cst = arith.constant dense<0.000000e+00> : vector<24x512xf32>
    %3 = tpu.matmul %2, %1, %cst {dimension_numbers = #tpu.dot_dimension_numbers<[1], [0], [0], [1], [0, 0, 1, 1], [], []>} : vector<24x8xf32>, vector<8x512xf32>, vector<24x512xf32> -> vector<24x512xf32>
    %c0_4 = arith.constant 0 : index
    %c0_5 = arith.constant 0 : index
    %4 = vector.load %arg3[%c0_4, %c0_5] : memref<24x1xf32, #tpu.memory_space<vmem>>, vector<24x1xf32>
    %5 = vector.broadcast %4 : vector<24x1xf32> to vector<24x512xf32>
    %6 = arith.addf %3, %5 : vector<24x512xf32>
    %cst_6 = arith.constant 0.000000e+00 : f32
    %cst_7 = arith.constant 6.000000e+00 : f32
    %7 = vector.broadcast %cst_6 : f32 to vector<24x512xf32>
    %8 = arith.maximumf %7, %6 : vector<24x512xf32>
    %9 = vector.broadcast %cst_7 : f32 to vector<24x512xf32>
    %10 = arith.minimumf %9, %8 : vector<24x512xf32>
    %c0_8 = arith.constant 0 : index
    %c0_9 = arith.constant 0 : index
    %11 = vector.load %arg6[%c0_8, %c0_9] : memref<4x512xf32, #tpu.memory_space<vmem>>, vector<1x512xf32>
    %12 = vector.broadcast %11 : vector<1x512xf32> to vector<24x512xf32>
    %13 = arith.mulf %10, %12 : vector<24x512xf32>
    %c1 = arith.constant 1 : index
    %c0_10 = arith.constant 0 : index
    %14 = vector.load %arg6[%c1, %c0_10] : memref<4x512xf32, #tpu.memory_space<vmem>>, vector<1x512xf32>
    %15 = vector.broadcast %14 : vector<1x512xf32> to vector<24x512xf32>
    %16 = arith.mulf %10, %15 : vector<24x512xf32>
    %c17_i32 = arith.constant 17 : i32
    %17 = tpu.dynamic_rotate %13 by %c17_i32 dim 1 : vector<24x512xf32>, i32 -> vector<24x512xf32>
    %c0_11 = arith.constant 0 : index
    %c0_12 = arith.constant 0 : index
    %18 = vector.load %arg4[%c0_11, %c0_12] : memref<24x9xf32, #tpu.memory_space<vmem>>, vector<24x1xf32>
    %19 = vector.broadcast %18 : vector<24x1xf32> to vector<24x512xf32>
    %20 = arith.mulf %17, %19 : vector<24x512xf32>
    %c16_i32 = arith.constant 16 : i32
    %21 = tpu.dynamic_rotate %10 by %c16_i32 dim 1 : vector<24x512xf32>, i32 -> vector<24x512xf32>
    %c0_13 = arith.constant 0 : index
    %c1_14 = arith.constant 1 : index
    %22 = vector.load %arg4[%c0_13, %c1_14] : memref<24x9xf32, #tpu.memory_space<vmem>>, vector<24x1xf32>
    %23 = vector.broadcast %22 : vector<24x1xf32> to vector<24x512xf32>
    %24 = arith.mulf %21, %23 : vector<24x512xf32>
    %25 = arith.addf %20, %24 : vector<24x512xf32>
    %c15_i32 = arith.constant 15 : i32
    %26 = tpu.dynamic_rotate %16 by %c15_i32 dim 1 : vector<24x512xf32>, i32 -> vector<24x512xf32>
    %c0_15 = arith.constant 0 : index
    %c2 = arith.constant 2 : index
    %27 = vector.load %arg4[%c0_15, %c2] : memref<24x9xf32, #tpu.memory_space<vmem>>, vector<24x1xf32>
    %28 = vector.broadcast %27 : vector<24x1xf32> to vector<24x512xf32>
    %29 = arith.mulf %26, %28 : vector<24x512xf32>
    %30 = arith.addf %25, %29 : vector<24x512xf32>
    %c2_16 = arith.constant 2 : index
    %c0_17 = arith.constant 0 : index
    %31 = vector.load %arg6[%c2_16, %c0_17] : memref<4x512xf32, #tpu.memory_space<vmem>>, vector<1x512xf32>
    %32 = vector.broadcast %31 : vector<1x512xf32> to vector<24x512xf32>
    %33 = arith.mulf %30, %32 : vector<24x512xf32>
    %c1_i32 = arith.constant 1 : i32
    %34 = tpu.dynamic_rotate %13 by %c1_i32 dim 1 : vector<24x512xf32>, i32 -> vector<24x512xf32>
    %c0_18 = arith.constant 0 : index
    %c3 = arith.constant 3 : index
    %35 = vector.load %arg4[%c0_18, %c3] : memref<24x9xf32, #tpu.memory_space<vmem>>, vector<24x1xf32>
    %36 = vector.broadcast %35 : vector<24x1xf32> to vector<24x512xf32>
    %37 = arith.mulf %34, %36 : vector<24x512xf32>
    %c0_19 = arith.constant 0 : index
    %c4 = arith.constant 4 : index
    %38 = vector.load %arg4[%c0_19, %c4] : memref<24x9xf32, #tpu.memory_space<vmem>>, vector<24x1xf32>
    %39 = vector.broadcast %38 : vector<24x1xf32> to vector<24x512xf32>
    %40 = arith.mulf %10, %39 : vector<24x512xf32>
    %41 = arith.addf %37, %40 : vector<24x512xf32>
    %c511_i32 = arith.constant 511 : i32
    %42 = tpu.dynamic_rotate %16 by %c511_i32 dim 1 : vector<24x512xf32>, i32 -> vector<24x512xf32>
    %c0_20 = arith.constant 0 : index
    %c5 = arith.constant 5 : index
    %43 = vector.load %arg4[%c0_20, %c5] : memref<24x9xf32, #tpu.memory_space<vmem>>, vector<24x1xf32>
    %44 = vector.broadcast %43 : vector<24x1xf32> to vector<24x512xf32>
    %45 = arith.mulf %42, %44 : vector<24x512xf32>
    %46 = arith.addf %41, %45 : vector<24x512xf32>
    %47 = arith.addf %33, %46 : vector<24x512xf32>
    %c497_i32 = arith.constant 497 : i32
    %48 = tpu.dynamic_rotate %13 by %c497_i32 dim 1 : vector<24x512xf32>, i32 -> vector<24x512xf32>
    %c0_21 = arith.constant 0 : index
    %c6 = arith.constant 6 : index
    %49 = vector.load %arg4[%c0_21, %c6] : memref<24x9xf32, #tpu.memory_space<vmem>>, vector<24x1xf32>
    %50 = vector.broadcast %49 : vector<24x1xf32> to vector<24x512xf32>
    %51 = arith.mulf %48, %50 : vector<24x512xf32>
    %c496_i32 = arith.constant 496 : i32
    %52 = tpu.dynamic_rotate %10 by %c496_i32 dim 1 : vector<24x512xf32>, i32 -> vector<24x512xf32>
    %c0_22 = arith.constant 0 : index
    %c7 = arith.constant 7 : index
    %53 = vector.load %arg4[%c0_22, %c7] : memref<24x9xf32, #tpu.memory_space<vmem>>, vector<24x1xf32>
    %54 = vector.broadcast %53 : vector<24x1xf32> to vector<24x512xf32>
    %55 = arith.mulf %52, %54 : vector<24x512xf32>
    %56 = arith.addf %51, %55 : vector<24x512xf32>
    %c495_i32 = arith.constant 495 : i32
    %57 = tpu.dynamic_rotate %16 by %c495_i32 dim 1 : vector<24x512xf32>, i32 -> vector<24x512xf32>
    %c0_23 = arith.constant 0 : index
    %c8 = arith.constant 8 : index
    %58 = vector.load %arg4[%c0_23, %c8] : memref<24x9xf32, #tpu.memory_space<vmem>>, vector<24x1xf32>
    %59 = vector.broadcast %58 : vector<24x1xf32> to vector<24x512xf32>
    %60 = arith.mulf %57, %59 : vector<24x512xf32>
    %61 = arith.addf %56, %60 : vector<24x512xf32>
    %c3_24 = arith.constant 3 : index
    %c0_25 = arith.constant 0 : index
    %62 = vector.load %arg6[%c3_24, %c0_25] : memref<4x512xf32, #tpu.memory_space<vmem>>, vector<1x512xf32>
    %63 = vector.broadcast %62 : vector<1x512xf32> to vector<24x512xf32>
    %64 = arith.mulf %61, %63 : vector<24x512xf32>
    %65 = arith.addf %47, %64 : vector<24x512xf32>
    %c0_26 = arith.constant 0 : index
    %c0_27 = arith.constant 0 : index
    %66 = vector.load %arg5[%c0_26, %c0_27] : memref<24x1xf32, #tpu.memory_space<vmem>>, vector<24x1xf32>
    %67 = vector.broadcast %66 : vector<24x1xf32> to vector<24x512xf32>
    %68 = arith.addf %65, %67 : vector<24x512xf32>
    %cst_28 = arith.constant 0.000000e+00 : f32
    %cst_29 = arith.constant 6.000000e+00 : f32
    %69 = vector.broadcast %cst_28 : f32 to vector<24x512xf32>
    %70 = arith.maximumf %69, %68 : vector<24x512xf32>
    %71 = vector.broadcast %cst_29 : f32 to vector<24x512xf32>
    %72 = arith.minimumf %71, %70 : vector<24x512xf32>
    %c0_30 = arith.constant 0 : index
    %c0_31 = arith.constant 0 : index
    %73 = vector.load %arg7[%c0_30, %c0_31] : memref<8x24xf32, #tpu.memory_space<vmem>>, vector<8x24xf32>
    %cst_32 = arith.constant dense<0.000000e+00> : vector<8x512xf32>
    %74 = tpu.matmul %73, %72, %cst_32 {dimension_numbers = #tpu.dot_dimension_numbers<[1], [0], [0], [1], [0, 0, 1, 1], [], []>} : vector<8x24xf32>, vector<24x512xf32>, vector<8x512xf32> -> vector<8x512xf32>
    %c0_33 = arith.constant 0 : index
    %c0_34 = arith.constant 0 : index
    %75 = vector.load %arg8[%c0_33, %c0_34] : memref<8x1xf32, #tpu.memory_space<vmem>>, vector<8x1xf32>
    %76 = vector.broadcast %75 : vector<8x1xf32> to vector<8x512xf32>
    %77 = arith.addf %74, %76 : vector<8x512xf32>
    %78 = arith.addf %77, %1 : vector<8x512xf32>
    %c0_35 = arith.constant 0 : index
    %c0_36 = arith.constant 0 : index
    %c0_37 = arith.constant 0 : index
    %79 = vector.load %arg9[%c0_35, %c0_36, %c0_37] : memref<1x8x512xf32, #tpu.memory_space<vmem>>, vector<1x8x512xf32>
    %80 = vector.shape_cast %79 : vector<1x8x512xf32> to vector<8x512xf32>
    %81 = vector.shape_cast %78 : vector<8x512xf32> to vector<1x8x512xf32>
    tpu.vector_store %arg9[%c0_35, %c0_36, %c0_37], %81 {strides = array<i32>} : memref<1x8x512xf32, #tpu.memory_space<vmem>>, vector<1x8x512xf32>,
    return
  }
  func.func @transform_0(%arg0: i32) -> (i32, i32, i32) {
    %c0_i32 = arith.constant 0 : i32
    %c0_i32_0 = arith.constant 0 : i32
    %c0_i32_1 = arith.constant 0 : i32
    return %arg0, %c0_i32, %c0_i32_0 : i32, i32, i32
  }
  func.func @transform_1(%arg0: i32) -> (i32, i32) {
    %c0_i32 = arith.constant 0 : i32
    %c0_i32_0 = arith.constant 0 : i32
    %c0_i32_1 = arith.constant 0 : i32
    return %c0_i32, %c0_i32_0 : i32, i32
  }
  func.func @transform_2(%arg0: i32) -> (i32, i32) {
    %c0_i32 = arith.constant 0 : i32
    %c0_i32_0 = arith.constant 0 : i32
    %c0_i32_1 = arith.constant 0 : i32
    return %c0_i32, %c0_i32_0 : i32, i32
  }
  func.func @transform_3(%arg0: i32) -> (i32, i32) {
    %c0_i32 = arith.constant 0 : i32
    %c0_i32_0 = arith.constant 0 : i32
    %c0_i32_1 = arith.constant 0 : i32
    return %c0_i32, %c0_i32_0 : i32, i32
  }
  func.func @transform_4(%arg0: i32) -> (i32, i32) {
    %c0_i32 = arith.constant 0 : i32
    %c0_i32_0 = arith.constant 0 : i32
    %c0_i32_1 = arith.constant 0 : i32
    return %c0_i32, %c0_i32_0 : i32, i32
  }
  func.func @transform_5(%arg0: i32) -> (i32, i32) {
    %c0_i32 = arith.constant 0 : i32
    %c0_i32_0 = arith.constant 0 : i32
    %c0_i32_1 = arith.constant 0 : i32
    return %c0_i32, %c0_i32_0 : i32, i32
  }
  func.func @transform_6(%arg0: i32) -> (i32, i32) {
    %c0_i32 = arith.constant 0 : i32
    %c0_i32_0 = arith.constant 0 : i32
    %c0_i32_1 = arith.constant 0 : i32
    return %c0_i32, %c0_i32_0 : i32, i32
  }
  func.func @transform_7(%arg0: i32) -> (i32, i32) {
    %c0_i32 = arith.constant 0 : i32
    %c0_i32_0 = arith.constant 0 : i32
    %c0_i32_1 = arith.constant 0 : i32
    return %c0_i32, %c0_i32_0 : i32, i32
  }
  func.func @transform_8(%arg0: i32) -> (i32, i32, i32) {
    %c0_i32 = arith.constant 0 : i32
    %c0_i32_0 = arith.constant 0 : i32
    %c0_i32_1 = arith.constant 0 : i32
    return %arg0, %c0_i32, %c0_i32_0 : i32, i32, i32
  }
}

</mosaic_0001>

<llo_original>
// kernel: tpu_custom_call.1
$region0: #{tpu_custom_call.1}
  #allocation0 [shape = 'u32[]', space=smem, size = 0x4, offset = 0x4, fixed_abs, tag = 'smem constant byte address 0x4 - core index']
  #allocation1 [shape = 'u32[144,128]{1,0:T(1,128)}', space=vmem, size = 0x12000, scoped, tag = 'internal scratch']
  %s0 = inlined_call_operand.vmem [shape: f32[2,8,512], index: 0, kind: input, shape index: {}]
  %s1 = inlined_call_operand.vmem [shape: f32[24,8], index: 1, kind: input, shape index: {}]
  %s2 = inlined_call_operand.vmem [shape: f32[24,1], index: 2, kind: input, shape index: {}]
  %s3 = inlined_call_operand.vmem [shape: f32[24,9], index: 3, kind: input, shape index: {}]
  %s4 = inlined_call_operand.vmem [shape: f32[24,1], index: 4, kind: input, shape index: {}]
  %s5 = inlined_call_operand.vmem [shape: f32[4,512], index: 5, kind: input, shape index: {}]
  %s6 = inlined_call_operand.vmem [shape: f32[8,24], index: 6, kind: input, shape index: {}]
  %s7 = inlined_call_operand.vmem [shape: f32[8,1], index: 7, kind: input, shape index: {}]
  %s8 = inlined_call_operand.hbm [shape: f32[2,8,512], index: 8, kind: output, shape index: {}]
  %s9 = sld [smem:[#allocation0]]
  $region65: #{tpu_custom_call.1} parent=0
    _
  %s11 = ssub.s32 1, %s9
  %s12 = scalar_select 0, %s11, %s9
  $region1: #{tpu_custom_call.1} parent=0
    #allocation2 [shape = 'u8[32768]{0}', space=vmem, size = 0x8000, scoped, tag = 'output window, operand 0']
    #allocation3 [shape = 's32[2]{0}', space=sflag, size = 0x8, scoped, tag = 'scoped memory for tpu_custom_call.1']
    %13 = vsyncpa [#allocation3], 0
    %s14 = scalar_lea.sflag [#allocation3], 1
    %15 = vsyncpa %s14, 0
    loop: start=0, step=1, limit=4
    $region2: #{tpu_custom_call.1} parent=1 // loop_pre_header
      _
    $region3: #{tpu_custom_call.1} parent=1 // loop_header
      %s17 = sphi 0, %s21
      %p18 = scmp.ge.s32.totalorder %s17, 4
      %s27 = sphi 0, %s29
      %s30 = sphi 0, %s27
      %s31 = sphi 0, %s30
      %s47 = sphi 0, %s31
      %s51 = sphi 0, %s51
      %s53 = sphi 0, %s51
      %s54 = sphi 0, %s53
      %s68 = sphi 0, %s54
      %s72 = sphi 0, %s72
      %s74 = sphi 0, %s72
      %s75 = sphi 0, %s74
      %s89 = sphi 0, %s75
      %s93 = sphi 0, %s93
      %s95 = sphi 0, %s93
      %s96 = sphi 0, %s95
      %s110 = sphi 0, %s96
      %s114 = sphi 0, %s114
      %s116 = sphi 0, %s114
      %s117 = sphi 0, %s116
      %s131 = sphi 0, %s117
      %s135 = sphi 0, %s135
      %s137 = sphi 0, %s135
      %s138 = sphi 0, %s137
      %s152 = sphi 0, %s138
      %s156 = sphi 0, %s156
      %s158 = sphi 0, %s156
      %s159 = sphi 0, %s158
      %s173 = sphi 0, %s159
      %s177 = sphi 0, %s177
      %s179 = sphi 0, %s177
      %s180 = sphi 0, %s179
      %s194 = sphi 0, %s180
      %s200 = sphi 0, %s202
      %s203 = sphi 0, %s200
      %s204 = sphi 0, %s203
      %s220 = sphi 0, %s204
    $region4: #{tpu_custom_call.1} parent=1 // loop_header_branch
      %20 = sbr.rel (%p18) target = $region8
    $region5: #{tpu_custom_call.1} parent=1 // loop_body
      %s22 = ssub.s32 %s17, 1
      %s23 = ssub.s32 %s17, 2
      %s24 = sadd.s32 %s17, 1
      %s25 = ssub.s32 %s17, %s24
      %p26 = scmp.eq.s32.totalorder %s25, 0
      %s28 = sadd.s32 %s27, 1
      %s29 = scalar_select %p26, %s27, %s28
      %p32 = pneg %p26
      %p33 = scmp.eq.s32.totalorder %s17, 1
      %p34 = por %p32, %p33
      %p35 = scmp.ne.s32.totalorder %s27, %s30
      %p36 = scmp.eq.s32.totalorder %s17, 0
      %p37 = por %p35, %p36
      %p38 = scmp.ne.s32.totalorder %s27, %s30
      %p39 = scmp.eq.s32.totalorder %s22, 1
      %p40 = por %p38, %p39
      %p41 = scmp.ne.s32.totalorder %s30, %s31
      %p42 = scmp.eq.s32.totalorder %s22, 0
      %p43 = por %p41, %p42
      %p44 = scmp.ne.s32.totalorder %s30, %s31
      %p45 = scmp.eq.s32.totalorder %s23, 1
      %p46 = por %p44, %p45
      %p48 = scmp.ne.s32.totalorder %s31, %s47
      %p49 = scmp.eq.s32.totalorder %s23, 0
      %p50 = por %p48, %p49
      %s52 = sadd.s32 %s51, 1
      %p55 = scmp.eq.s32.totalorder %s17, 1
      %p56 = scmp.ne.s32.totalorder %s51, %s53
      %p57 = scmp.eq.s32.totalorder %s17, 0
      %p58 = por %p56, %p57
      %p59 = scmp.ne.s32.totalorder %s51, %s53
      %p60 = scmp.eq.s32.totalorder %s22, 1
      %p61 = por %p59, %p60
      %p62 = scmp.ne.s32.totalorder %s53, %s54
      %p63 = scmp.eq.s32.totalorder %s22, 0
      %p64 = por %p62, %p63
      %p65 = scmp.ne.s32.totalorder %s53, %s54
      %p66 = scmp.eq.s32.totalorder %s23, 1
      %p67 = por %p65, %p66
      %p69 = scmp.ne.s32.totalorder %s54, %s68
      %p70 = scmp.eq.s32.totalorder %s23, 0
      %p71 = por %p69, %p70
      %s73 = sadd.s32 %s72, 1
      %p76 = scmp.eq.s32.totalorder %s17, 1
      %p77 = scmp.ne.s32.totalorder %s72, %s74
      %p78 = scmp.eq.s32.totalorder %s17, 0
      %p79 = por %p77, %p78
      %p80 = scmp.ne.s32.totalorder %s72, %s74
      %p81 = scmp.eq.s32.totalorder %s22, 1
      %p82 = por %p80, %p81
      %p83 = scmp.ne.s32.totalorder %s74, %s75
      %p84 = scmp.eq.s32.totalorder %s22, 0
      %p85 = por %p83, %p84
      %p86 = scmp.ne.s32.totalorder %s74, %s75
      %p87 = scmp.eq.s32.totalorder %s23, 1
      %p88 = por %p86, %p87
      %p90 = scmp.ne.s32.totalorder %s75, %s89
      %p91 = scmp.eq.s32.totalorder %s23, 0
      %p92 = por %p90, %p91
      %s94 = sadd.s32 %s93, 1
      %p97 = scmp.eq.s32.totalorder %s17, 1
      %p98 = scmp.ne.s32.totalorder %s93, %s95
      %p99 = scmp.eq.s32.totalorder %s17, 0
      %p100 = por %p98, %p99
      %p101 = scmp.ne.s32.totalorder %s93, %s95
      %p102 = scmp.eq.s32.totalorder %s22, 1
      %p103 = por %p101, %p102
      %p104 = scmp.ne.s32.totalorder %s95, %s96
      %p105 = scmp.eq.s32.totalorder %s22, 0
      %p106 = por %p104, %p105
      %p107 = scmp.ne.s32.totalorder %s95, %s96
      %p108 = scmp.eq.s32.totalorder %s23, 1
      %p109 = por %p107, %p108
      %p111 = scmp.ne.s32.totalorder %s96, %s110
      %p112 = scmp.eq.s32.totalorder %s23, 0
      %p113 = por %p111, %p112
      %s115 = sadd.s32 %s114, 1
      %p118 = scmp.eq.s32.totalorder %s17, 1
      %p119 = scmp.ne.s32.totalorder %s114, %s116
      %p120 = scmp.eq.s32.totalorder %s17, 0
      %p121 = por %p119, %p120
      %p122 = scmp.ne.s32.totalorder %s114, %s116
      %p123 = scmp.eq.s32.totalorder %s22, 1
      %p124 = por %p122, %p123
      %p125 = scmp.ne.s32.totalorder %s116, %s117
      %p126 = scmp.eq.s32.totalorder %s22, 0
      %p127 = por %p125, %p126
      %p128 = scmp.ne.s32.totalorder %s116, %s117
      %p129 = scmp.eq.s32.totalorder %s23, 1
      %p130 = por %p128, %p129
      %p132 = scmp.ne.s32.totalorder %s117, %s131
      %p133 = scmp.eq.s32.totalorder %s23, 0
      %p134 = por %p132, %p133
      %s136 = sadd.s32 %s135, 1
      %p139 = scmp.eq.s32.totalorder %s17, 1
      %p140 = scmp.ne.s32.totalorder %s135, %s137
      %p141 = scmp.eq.s32.totalorder %s17, 0
      %p142 = por %p140, %p141
      %p143 = scmp.ne.s32.totalorder %s135, %s137
      %p144 = scmp.eq.s32.totalorder %s22, 1
      %p145 = por %p143, %p144
      %p146 = scmp.ne.s32.totalorder %s137, %s138
      %p147 = scmp.eq.s32.totalorder %s22, 0
      %p148 = por %p146, %p147
      %p149 = scmp.ne.s32.totalorder %s137, %s138
      %p150 = scmp.eq.s32.totalorder %s23, 1
      %p151 = por %p149, %p150
      %p153 = scmp.ne.s32.totalorder %s138, %s152
      %p154 = scmp.eq.s32.totalorder %s23, 0
      %p155 = por %p153, %p154
      %s157 = sadd.s32 %s156, 1
      %p160 = scmp.eq.s32.totalorder %s17, 1
      %p161 = scmp.ne.s32.totalorder %s156, %s158
      %p162 = scmp.eq.s32.totalorder %s17, 0
      %p163 = por %p161, %p162
      %p164 = scmp.ne.s32.totalorder %s156, %s158
      %p165 = scmp.eq.s32.totalorder %s22, 1
      %p166 = por %p164, %p165
      %p167 = scmp.ne.s32.totalorder %s158, %s159
      %p168 = scmp.eq.s32.totalorder %s22, 0
      %p169 = por %p167, %p168
      %p170 = scmp.ne.s32.totalorder %s158, %s159
      %p171 = scmp.eq.s32.totalorder %s23, 1
      %p172 = por %p170, %p171
      %p174 = scmp.ne.s32.totalorder %s159, %s173
      %p175 = scmp.eq.s32.totalorder %s23, 0
      %p176 = por %p174, %p175
      %s178 = sadd.s32 %s177, 1
      %p181 = scmp.eq.s32.totalorder %s17, 1
      %p182 = scmp.ne.s32.totalorder %s177, %s179
      %p183 = scmp.eq.s32.totalorder %s17, 0
      %p184 = por %p182, %p183
      %p185 = scmp.ne.s32.totalorder %s177, %s179
      %p186 = scmp.eq.s32.totalorder %s22, 1
      %p187 = por %p185, %p186
      %p188 = scmp.ne.s32.totalorder %s179, %s180
      %p189 = scmp.eq.s32.totalorder %s22, 0
      %p190 = por %p188, %p189
      %p191 = scmp.ne.s32.totalorder %s179, %s180
      %p192 = scmp.eq.s32.totalorder %s23, 1
      %p193 = por %p191, %p192
      %p195 = scmp.ne.s32.totalorder %s180, %s194
      %p196 = scmp.eq.s32.totalorder %s23, 0
      %p197 = por %p195, %p196
      %s198 = ssub.s32 %s17, %s24
      %p199 = scmp.eq.s32.totalorder %s198, 0
      %s201 = sadd.s32 %s200, 1
      %s202 = scalar_select %p199, %s200, %s201
      %p205 = pneg %p199
      %p206 = scmp.eq.s32.totalorder %s17, 1
      %p207 = por %p205, %p206
      %p208 = scmp.ne.s32.totalorder %s200, %s203
      %p209 = scmp.eq.s32.totalorder %s17, 0
      %p210 = por %p208, %p209
      %p211 = scmp.ne.s32.totalorder %s200, %s203
      %p212 = scmp.eq.s32.totalorder %s22, 1
      %p213 = por %p211, %p212
      %p214 = scmp.ne.s32.totalorder %s203, %s204
      %p215 = scmp.eq.s32.totalorder %s22, 0
      %p216 = por %p214, %p215
      %p217 = scmp.ne.s32.totalorder %s203, %s204
      %p218 = scmp.eq.s32.totalorder %s23, 1
      %p219 = por %p217, %p218
      %p221 = scmp.ne.s32.totalorder %s204, %s220
      %p222 = scmp.eq.s32.totalorder %s23, 0
      %p223 = por %p221, %p222
      %p224 = scmp.le.s32.totalorder 1, %s17
      %p225 = scmp.lt.s32.totalorder %s17, 3
      %p226 = pnand %p224, %p225
      %p227 = pneg %p226
      // Predicated region
      $region9: #{tpu_custom_call.1} parent=5 // pred_check
        _
      $region10: #{tpu_custom_call.1} parent=5 // pred_check_branch
        %229 = sbr.rel (%p226) target = $region12
      $region11: #{tpu_custom_call.1} parent=5 // pred_region
        %s230 = ssub.s32 %s17, 1
        // Predicated region
        $region13: #{tpu_custom_call.1} parent=11 // pred_check
          %p231 = pneg %p64
        $region14: #{tpu_custom_call.1} parent=11 // pred_check_branch
          %233 = sbr.rel (%p231) target = $region16
        $region15: #{tpu_custom_call.1} parent=11 // pred_region
          _
        $region16: #{tpu_custom_call.1} parent=11 // pred_fallthru
          _
        // Predicated region
        $region17: #{tpu_custom_call.1} parent=11 // pred_check
          %p234 = pneg %p85
        $region18: #{tpu_custom_call.1} parent=11 // pred_check_branch
          %236 = sbr.rel (%p234) target = $region20
        $region19: #{tpu_custom_call.1} parent=11 // pred_region
          _
        $region20: #{tpu_custom_call.1} parent=11 // pred_fallthru
          _
        // Predicated region
        $region21: #{tpu_custom_call.1} parent=11 // pred_check
          %p237 = pneg %p106
        $region22: #{tpu_custom_call.1} parent=11 // pred_check_branch
          %239 = sbr.rel (%p237) target = $region24
        $region23: #{tpu_custom_call.1} parent=11 // pred_region
          _
        $region24: #{tpu_custom_call.1} parent=11 // pred_fallthru
          _
        // Predicated region
        $region25: #{tpu_custom_call.1} parent=11 // pred_check
          %p240 = pneg %p127
        $region26: #{tpu_custom_call.1} parent=11 // pred_check_branch
          %242 = sbr.rel (%p240) target = $region28
        $region27: #{tpu_custom_call.1} parent=11 // pred_region
          _
        $region28: #{tpu_custom_call.1} parent=11 // pred_fallthru
          _
        // Predicated region
        $region29: #{tpu_custom_call.1} parent=11 // pred_check
          %p243 = pneg %p148
        $region30: #{tpu_custom_call.1} parent=11 // pred_check_branch
          %245 = sbr.rel (%p243) target = $region32
        $region31: #{tpu_custom_call.1} parent=11 // pred_region
          _
        $region32: #{tpu_custom_call.1} parent=11 // pred_fallthru
          _
        // Predicated region
        $region33: #{tpu_custom_call.1} parent=11 // pred_check
          %p246 = pneg %p169
        $region34: #{tpu_custom_call.1} parent=11 // pred_check_branch
          %248 = sbr.rel (%p246) target = $region36
        $region35: #{tpu_custom_call.1} parent=11 // pred_region
          _
        $region36: #{tpu_custom_call.1} parent=11 // pred_fallthru
          _
        // Predicated region
        $region37: #{tpu_custom_call.1} parent=11 // pred_check
          %p249 = pneg %p190
        $region38: #{tpu_custom_call.1} parent=11 // pred_check_branch
          %251 = sbr.rel (%p249) target = $region40
        $region39: #{tpu_custom_call.1} parent=11 // pred_region
          _
        $region40: #{tpu_custom_call.1} parent=11 // pred_fallthru
          _
      $region12: #{tpu_custom_call.1} parent=5 // pred_fallthru
        _
      %p252 = scmp.lt.s32.totalorder %s17, 2
      // Predicated region
      $region41: #{tpu_custom_call.1} parent=5 // pred_check
        %p253 = pneg %p252
      $region42: #{tpu_custom_call.1} parent=5 // pred_check_branch
        %255 = sbr.rel (%p253) target = $region44
      $region43: #{tpu_custom_call.1} parent=5 // pred_region
        // Predicated region
        $region45: #{tpu_custom_call.1} parent=43 // pred_check
          %p256 = pneg %p37
        $region46: #{tpu_custom_call.1} parent=43 // pred_check_branch
          %258 = sbr.rel (%p256) target = $region48
        $region47: #{tpu_custom_call.1} parent=43 // pred_region
          %p259 = scmp.lt.s32.totalorder %s17, 1
          %s260 = scalar_select %p259, %s17, 1
          %s261 = smul.addr %s260, 4
          %s262 = smul.addr %s261, 8
          %s263 = scalar_lea.vmem %s0, %s262
        $region48: #{tpu_custom_call.1} parent=43 // pred_fallthru
          _
      $region44: #{tpu_custom_call.1} parent=5 // pred_fallthru
        _
      %p264 = scmp.le.s32.totalorder 1, %s17
      %p265 = scmp.lt.s32.totalorder %s17, 3
      %p266 = pnand %p264, %p265
      %p267 = pneg %p266
      // Predicated region
      $region49: #{tpu_custom_call.1} parent=5 // pred_check
        _
      $region50: #{tpu_custom_call.1} parent=5 // pred_check_branch
        %269 = sbr.rel (%p266) target = $region52
      $region51: #{tpu_custom_call.1} parent=5 // pred_region
        %s270 = ssub.s32 %s17, 1
        %p271 = scmp.lt.s32.totalorder %s22, 1
        %s272 = scalar_select %p271, %s22, 1
        %s273 = smul.addr %s272, 4
        %s274 = smul.addr %s273, 8
        %s275 = scalar_lea.vmem %s0, %s274
        %p276 = pneg %p43
        %p277 = pneg %p40
        %p278 = pneg %p64
        %p279 = pneg %p61
        %p280 = pneg %p85
        %p281 = pneg %p82
        %p282 = pneg %p106
        %p283 = pneg %p103
        %p284 = pneg %p127
        %p285 = pneg %p124
        %p286 = pneg %p148
        %p287 = pneg %p145
        %p288 = pneg %p169
        %p289 = pneg %p166
        %p290 = pneg %p190
        %p291 = pneg %p187
        %p292 = pneg %p216
        %p293 = pneg %p213
        %s294 = sand.u32 %s203, 1
        %s295 = scalar_lea.sflag [#allocation3], %s294
        %s296 = sand.u32 %s203, 1
        %s297 = smul.addr %s296, 32
        %s298 = scalar_lea.vmem [#allocation2], %s297
        %p299 = scmp.lt.s32.totalorder %s22, 1
        %s300 = scalar_select %p299, %s22, 1
        %s301 = smul.addr %s300, 4
        %s302 = smul.addr %s301, 8
        %s303 = scalar_lea.vmem %s0, %s302
        %v304 = vld [vmem:[%s303] sm:$0xff]
        %v305 = vld [vmem:[%s303 + $0x8] sm:$0xff]
        %v306 = vld [vmem:[%s303 + $0x10] sm:$0xff]
        %v307 = vld [vmem:[%s303 + $0x18] sm:$0xff]
        %v308 = vld [vmem:[%s1] sm:$0xff]
        %v309 = vld [vmem:[%s1 + $0x8] sm:$0xff]
        %v310 = vld [vmem:[%s1 + $0x10] sm:$0xff]
        %v311 = vld [vmem:[%s2] sm:$0xff]
        %v312 = vld [vmem:[%s2 + $0x8] sm:$0xff]
        %v313 = vld [vmem:[%s2 + $0x10] sm:$0xff]
        %315 = vset.pattern.permute.xlu0 0
        %316 = vperm.xlu0 %315, %v311
        %v317 = vpop.permute.xlu0 %316
        %320 = vset.pattern.permute.xlu0 0
        %321 = vperm.xlu0 %320, %v312
        %v322 = vpop.permute.xlu0 %321
        %325 = vset.pattern.permute.xlu0 0
        %326 = vperm.xlu0 %325, %v313
        %v327 = vpop.permute.xlu0 %326
        %vm329 = vcmask 64512
        %v331 = vsel %vm329, %v308, 0
        %v334 = vsel %vm329, %v309, 0
        %v337 = vsel %vm329, %v310, 0
        %339 = vmatprep.subr.mxu0 %v305
        %340 = vmatpush1.msra.mxu0 %v304
        %341 = vmatprep.subr.mxu0 0.0
        %342 = vmatpush1.msra.mxu0 0.0
        %343 = vmatprep.subr.mxu0 0.0
        %344 = vmatpush1.msra.mxu0 0.0
        %345 = vmatprep.subr.mxu0 0.0
        %346 = vmatpush1.msra.mxu0 0.0
        %347 = vmatprep.subr.mxu0 0.0
        %348 = vmatpush1.msra.mxu0 0.0
        %349 = vmatprep.subr.mxu0 0.0
        %350 = vmatpush1.msra.mxu0 0.0
        %351 = vmatprep.subr.mxu0 0.0
        %352 = vmatpush1.msra.mxu0 0.0
        %353 = vmatprep.subr.mxu0 0.0
        %354 = vmatpush1.msra.mxu0 0.0
        %355 = vmatprep.subr.mxu0 0.0
        %356 = vmatpush1.msra.mxu0 0.0
        %357 = vmatprep.subr.mxu0 0.0
        %358 = vmatpush1.msra.mxu0 0.0
        %359 = vmatprep.subr.mxu0 0.0
        %360 = vmatpush1.msra.mxu0 0.0
        %361 = vmatprep.subr.mxu0 0.0
        %362 = vmatpush1.msra.mxu0 0.0
        %363 = vmatprep.subr.mxu0 0.0
        %364 = vmatpush1.msra.mxu0 0.0
        %365 = vmatprep.subr.mxu0 0.0
        %366 = vmatpush1.msra.mxu0 0.0
        %367 = vmatprep.subr.mxu0 0.0
        %368 = vmatpush1.msra.mxu0 0.0
        %369 = vmatprep.subr.mxu0 0.0
        %370 = vmatpush1.msra.mxu0 0.0
        %371 = vmatprep.subr.mxu0 0.0
        %372 = vmatpush1.msra.mxu0 0.0
        %373 = vmatprep.subr.mxu0 0.0
        %374 = vmatpush1.msra.mxu0 0.0
        %375 = vmatprep.subr.mxu0 0.0
        %376 = vmatpush1.msra.mxu0 0.0
        %377 = vmatprep.subr.mxu0 0.0
        %378 = vmatpush1.msra.mxu0 0.0
        %379 = vmatprep.subr.mxu0 0.0
        %380 = vmatpush1.msra.mxu0 0.0
        %381 = vmatprep.subr.mxu0 0.0
        %382 = vmatpush1.msra.mxu0 0.0
        %383 = vmatprep.subr.mxu0 0.0
        %384 = vmatpush1.msra.mxu0 0.0
        %385 = vmatprep.subr.mxu0 0.0
        %386 = vmatpush1.msra.mxu0 0.0
        %387 = vmatprep.subr.mxu0 0.0
        %388 = vmatpush1.msra.mxu0 0.0
        %389 = vmatprep.subr.mxu0 0.0
        %390 = vmatpush1.msra.mxu0 0.0
        %391 = vmatprep.subr.mxu0 0.0
        %392 = vmatpush1.msra.mxu0 0.0
        %393 = vmatprep.subr.mxu0 0.0
        %394 = vmatpush1.msra.mxu0 0.0
        %395 = vmatprep.subr.mxu0 0.0
        %396 = vmatpush1.msra.mxu0 0.0
        %397 = vmatprep.subr.mxu0 0.0
        %398 = vmatpush1.msra.mxu0 0.0
        %399 = vmatprep.subr.mxu0 0.0
        %400 = vmatpush1.msra.mxu0 0.0
        %401 = vmatprep.subr.mxu0 0.0
        %402 = vmatpush1.msra.mxu0 0.0
        %403 = vmatprep.mubr.f32.mxu0 0.0
        %404 = vmatmul.mubr.f32.gmra.mrb[0].mxu0 %v331
        %v405 = vpop.f32.mrb[0].mxu0
        %v406 = vadd.f32 %v317, %v405
        %v407 = vpop.f32.mrb[0].mxu0
        %v408 = vadd.f32 %v317, %v407
        %409 = vmatprep.mubr.f32.mxu0 0.0
        %410 = vmatmul.mubr.f32.gmra.mrb[0].mxu0 %v334
        %v411 = vpop.f32.mrb[0].mxu0
        %v412 = vadd.f32 %v322, %v411
        %v413 = vpop.f32.mrb[0].mxu0
        %v414 = vadd.f32 %v322, %v413
        %415 = vmatprep.mubr.f32.mxu0 0.0
        %416 = vmatmul.mubr.f32.gmra.mrb[0].mxu0 %v337
        %v417 = vpop.f32.mrb[0].mxu0
        %v418 = vadd.f32 %v327, %v417
        %v419 = vpop.f32.mrb[0].mxu0
        %v420 = vadd.f32 %v327, %v419
        %421 = vdwg.mxu0
        %422 = vmatprep.subr.mxu0 %v307
        %423 = vmatpush1.msra.mxu0 %v306
        %424 = vmatprep.subr.mxu0 0.0
        %425 = vmatpush1.msra.mxu0 0.0
        %426 = vmatprep.subr.mxu0 0.0
        %427 = vmatpush1.msra.mxu0 0.0
        %428 = vmatprep.subr.mxu0 0.0
        %429 = vmatpush1.msra.mxu0 0.0
        %430 = vmatprep.subr.mxu0 0.0
        %431 = vmatpush1.msra.mxu0 0.0
        %432 = vmatprep.subr.mxu0 0.0
        %433 = vmatpush1.msra.mxu0 0.0
        %434 = vmatprep.subr.mxu0 0.0
        %435 = vmatpush1.msra.mxu0 0.0
        %436 = vmatprep.subr.mxu0 0.0
        %437 = vmatpush1.msra.mxu0 0.0
        %438 = vmatprep.subr.mxu0 0.0
        %439 = vmatpush1.msra.mxu0 0.0
        %440 = vmatprep.subr.mxu0 0.0
        %441 = vmatpush1.msra.mxu0 0.0
        %442 = vmatprep.subr.mxu0 0.0
        %443 = vmatpush1.msra.mxu0 0.0
        %444 = vmatprep.subr.mxu0 0.0
        %445 = vmatpush1.msra.mxu0 0.0
        %446 = vmatprep.subr.mxu0 0.0
        %447 = vmatpush1.msra.mxu0 0.0
        %448 = vmatprep.subr.mxu0 0.0
        %449 = vmatpush1.msra.mxu0 0.0
        %450 = vmatprep.subr.mxu0 0.0
        %451 = vmatpush1.msra.mxu0 0.0
        %452 = vmatprep.subr.mxu0 0.0
        %453 = vmatpush1.msra.mxu0 0.0
        %454 = vmatprep.subr.mxu0 0.0
        %455 = vmatpush1.msra.mxu0 0.0
        %456 = vmatprep.subr.mxu0 0.0
        %457 = vmatpush1.msra.mxu0 0.0
        %458 = vmatprep.subr.mxu0 0.0
        %459 = vmatpush1.msra.mxu0 0.0
        %460 = vmatprep.subr.mxu0 0.0
        %461 = vmatpush1.msra.mxu0 0.0
        %462 = vmatprep.subr.mxu0 0.0
        %463 = vmatpush1.msra.mxu0 0.0
        %464 = vmatprep.subr.mxu0 0.0
        %465 = vmatpush1.msra.mxu0 0.0
        %466 = vmatprep.subr.mxu0 0.0
        %467 = vmatpush1.msra.mxu0 0.0
        %468 = vmatprep.subr.mxu0 0.0
        %469 = vmatpush1.msra.mxu0 0.0
        %470 = vmatprep.subr.mxu0 0.0
        %471 = vmatpush1.msra.mxu0 0.0
        %472 = vmatprep.subr.mxu0 0.0
        %473 = vmatpush1.msra.mxu0 0.0
        %474 = vmatprep.subr.mxu0 0.0
        %475 = vmatpush1.msra.mxu0 0.0
        %476 = vmatprep.subr.mxu0 0.0
        %477 = vmatpush1.msra.mxu0 0.0
        %478 = vmatprep.subr.mxu0 0.0
        %479 = vmatpush1.msra.mxu0 0.0
        %480 = vmatprep.subr.mxu0 0.0
        %481 = vmatpush1.msra.mxu0 0.0
        %482 = vmatprep.subr.mxu0 0.0
        %483 = vmatpush1.msra.mxu0 0.0
        %484 = vmatprep.subr.mxu0 0.0
        %485 = vmatpush1.msra.mxu0 0.0
        %486 = vmatprep.mubr.f32.mxu0 0.0
        %487 = vmatmul.mubr.f32.gmra.mrb[0].mxu0 %v331
        %v488 = vpop.f32.mrb[0].mxu0
        %v489 = vadd.f32 %v317, %v488
        %v490 = vpop.f32.mrb[0].mxu0
        %v491 = vadd.f32 %v317, %v490
        %492 = vmatprep.mubr.f32.mxu0 0.0
        %493 = vmatmul.mubr.f32.gmra.mrb[0].mxu0 %v334
        %v494 = vpop.f32.mrb[0].mxu0
        %v495 = vadd.f32 %v322, %v494
        %v496 = vpop.f32.mrb[0].mxu0
        %v497 = vadd.f32 %v322, %v496
        %498 = vmatprep.mubr.f32.mxu0 0.0
        %499 = vmatmul.mubr.f32.gmra.mrb[0].mxu0 %v337
        %v500 = vpop.f32.mrb[0].mxu0
        %v501 = vadd.f32 %v327, %v500
        %v502 = vpop.f32.mrb[0].mxu0
        %v503 = vadd.f32 %v327, %v502
        %504 = vdwg.mxu0
        %v505 = vmax.f32 %v406, 0.0
        %v506 = vmax.f32 %v408, 0.0
        %v507 = vmax.f32 %v489, 0.0
        %v508 = vmax.f32 %v491, 0.0
        %v509 = vmax.f32 %v412, 0.0
        %v510 = vmax.f32 %v414, 0.0
        %v511 = vmax.f32 %v495, 0.0
        %v512 = vmax.f32 %v497, 0.0
        %v513 = vmax.f32 %v418, 0.0
        %v514 = vmax.f32 %v420, 0.0
        %v515 = vmax.f32 %v501, 0.0
        %v516 = vmax.f32 %v503, 0.0
        %v517 = vmin.f32 %v505, 6.0
        %v518 = vmin.f32 %v506, 6.0
        %v519 = vmin.f32 %v507, 6.0
        %v520 = vmin.f32 %v508, 6.0
        %v521 = vmin.f32 %v509, 6.0
        %v522 = vmin.f32 %v510, 6.0
        %v523 = vmin.f32 %v511, 6.0
        %v524 = vmin.f32 %v512, 6.0
        %v525 = vmin.f32 %v513, 6.0
        %v526 = vmin.f32 %v514, 6.0
        %v527 = vmin.f32 %v515, 6.0
        %v528 = vmin.f32 %v516, 6.0
        %v529 = vld [vmem:[%s5] ss:$4 sm:$0xf]
        %v531 = vlaneseq
        %v532 = vshrl.u32 %v531, 7
        %v533 = vsub.s32 0, %v532
        %v534 = vrot.slane %v529, %v533
        %v535 = vlaneseq
        %v536 = vshrl.u32 %v535, 7
        %v537 = vsub.s32 1, %v536
        %v538 = vrot.slane %v529, %v537
        %v539 = vlaneseq
        %v540 = vshrl.u32 %v539, 7
        %v541 = vsub.s32 2, %v540
        %v542 = vrot.slane %v529, %v541
        %v543 = vlaneseq
        %v544 = vshrl.u32 %v543, 7
        %v545 = vsub.s32 3, %v544
        %v546 = vrot.slane %v529, %v545
        %v551 = vmul.f32 %v517, %v534
        %v552 = vmul.f32 %v518, %v538
        %v553 = vmul.f32 %v519, %v542
        %v554 = vmul.f32 %v520, %v546
        %v555 = vmul.f32 %v521, %v534
        %v556 = vmul.f32 %v522, %v538
        %v557 = vmul.f32 %v523, %v542
        %v558 = vmul.f32 %v524, %v546
        %v559 = vmul.f32 %v525, %v534
        %v560 = vmul.f32 %v526, %v538
        %v561 = vmul.f32 %v527, %v542
        %v562 = vmul.f32 %v528, %v546
        %s563 = scalar_lea.vmem %s5, 1
        %v564 = vld [vmem:[%s563] ss:$4 sm:$0xf]
        %v566 = vlaneseq
        %v567 = vshrl.u32 %v566, 7
        %v568 = vsub.s32 0, %v567
        %v569 = vrot.slane %v564, %v568
        %v570 = vlaneseq
        %v571 = vshrl.u32 %v570, 7
        %v572 = vsub.s32 1, %v571
        %v573 = vrot.slane %v564, %v572
        %v574 = vlaneseq
        %v575 = vshrl.u32 %v574, 7
        %v576 = vsub.s32 2, %v575
        %v577 = vrot.slane %v564, %v576
        %v578 = vlaneseq
        %v579 = vshrl.u32 %v578, 7
        %v580 = vsub.s32 3, %v579
        %v581 = vrot.slane %v564, %v580
        %v586 = vmul.f32 %v517, %v569
        %v587 = vmul.f32 %v518, %v573
        %v588 = vmul.f32 %v519, %v577
        %v589 = vmul.f32 %v520, %v581
        %v590 = vmul.f32 %v521, %v569
        %v591 = vmul.f32 %v522, %v573
        %v592 = vmul.f32 %v523, %v577
        %v593 = vmul.f32 %v524, %v581
        %v594 = vmul.f32 %v525, %v569
        %v595 = vmul.f32 %v526, %v573
        %v596 = vmul.f32 %v527, %v577
        %v597 = vmul.f32 %v528, %v581
        %598 = vrot.lane.b32.xlu0 %v551, 17
        %v599 = vpop.permute.xlu0 %598
        %600 = vrot.lane.b32.xlu0 %v555, 17
        %v601 = vpop.permute.xlu0 %600
        %602 = vrot.lane.b32.xlu0 %v559, 17
        %v603 = vpop.permute.xlu0 %602
        %604 = vrot.lane.b32.xlu0 %v552, 17
        %v605 = vpop.permute.xlu0 %604
        %606 = vrot.lane.b32.xlu0 %v556, 17
        %v607 = vpop.permute.xlu0 %606
        %608 = vrot.lane.b32.xlu0 %v560, 17
        %v609 = vpop.permute.xlu0 %608
        %610 = vrot.lane.b32.xlu0 %v553, 17
        %v611 = vpop.permute.xlu0 %610
        %612 = vrot.lane.b32.xlu0 %v557, 17
        %v613 = vpop.permute.xlu0 %612
        %614 = vrot.lane.b32.xlu0 %v561, 17
        %v615 = vpop.permute.xlu0 %614
        %616 = vrot.lane.b32.xlu0 %v554, 17
        %v617 = vpop.permute.xlu0 %616
        %618 = vrot.lane.b32.xlu0 %v558, 17
        %v619 = vpop.permute.xlu0 %618
        %620 = vrot.lane.b32.xlu0 %v562, 17
        %v621 = vpop.permute.xlu0 %620
        %v622 = vlaneseq
        %v623 = vand.u32 %v622, 127
        %vm624 = vcmp.lt.s32.totalorder %v623, 17
        %v625 = vsel %vm624, %v611, %v617
        %v626 = vsel %vm624, %v613, %v619
        %v627 = vsel %vm624, %v615, %v621
        %v628 = vsel %vm624, %v605, %v611
        %v629 = vsel %vm624, %v607, %v613
        %v630 = vsel %vm624, %v609, %v615
        %v631 = vsel %vm624, %v599, %v605
        %v632 = vsel %vm624, %v601, %v607
        %v633 = vsel %vm624, %v603, %v609
        %v634 = vsel %vm624, %v617, %v599
        %v635 = vsel %vm624, %v619, %v601
        %v636 = vsel %vm624, %v621, %v603
        %v637 = vld [vmem:[%s3] sm:$0xff]
        %v638 = vld [vmem:[%s3 + $0x8] sm:$0xff]
        %v639 = vld [vmem:[%s3 + $0x10] sm:$0xff]
        %641 = vset.pattern.permute.xlu0 0
        %642 = vperm.xlu0 %641, %v637
        %v643 = vpop.permute.xlu0 %642
        %646 = vset.pattern.permute.xlu0 0
        %647 = vperm.xlu0 %646, %v638
        %v648 = vpop.permute.xlu0 %647
        %651 = vset.pattern.permute.xlu0 0
        %652 = vperm.xlu0 %651, %v639
        %v653 = vpop.permute.xlu0 %652
        %v655 = vmul.f32 %v634, %v643
        %v656 = vmul.f32 %v631, %v643
        %v657 = vmul.f32 %v628, %v643
        %v658 = vmul.f32 %v625, %v643
        %v659 = vmul.f32 %v635, %v648
        %v660 = vmul.f32 %v632, %v648
        %v661 = vmul.f32 %v629, %v648
        %v662 = vmul.f32 %v626, %v648
        %v663 = vmul.f32 %v636, %v653
        %v664 = vmul.f32 %v633, %v653
        %v665 = vmul.f32 %v630, %v653
        %v666 = vmul.f32 %v627, %v653
        %667 = vrot.lane.b32.xlu0 %v517, 16
        %v668 = vpop.permute.xlu0 %667
        %669 = vrot.lane.b32.xlu0 %v521, 16
        %v670 = vpop.permute.xlu0 %669
        %671 = vrot.lane.b32.xlu0 %v525, 16
        %v672 = vpop.permute.xlu0 %671
        %673 = vrot.lane.b32.xlu0 %v518, 16
        %v674 = vpop.permute.xlu0 %673
        %675 = vrot.lane.b32.xlu0 %v522, 16
        %v676 = vpop.permute.xlu0 %675
        %677 = vrot.lane.b32.xlu0 %v526, 16
        %v678 = vpop.permute.xlu0 %677
        %679 = vrot.lane.b32.xlu0 %v519, 16
        %v680 = vpop.permute.xlu0 %679
        %681 = vrot.lane.b32.xlu0 %v523, 16
        %v682 = vpop.permute.xlu0 %681
        %683 = vrot.lane.b32.xlu0 %v527, 16
        %v684 = vpop.permute.xlu0 %683
        %685 = vrot.lane.b32.xlu0 %v520, 16
        %v686 = vpop.permute.xlu0 %685
        %687 = vrot.lane.b32.xlu0 %v524, 16
        %v688 = vpop.permute.xlu0 %687
        %689 = vrot.lane.b32.xlu0 %v528, 16
        %v690 = vpop.permute.xlu0 %689
        %vm691 = vcmp.lt.s32.totalorder %v623, 16
        %v692 = vsel %vm691, %v680, %v686
        %v693 = vsel %vm691, %v682, %v688
        %v694 = vsel %vm691, %v684, %v690
        %v695 = vsel %vm691, %v674, %v680
        %v696 = vsel %vm691, %v676, %v682
        %v697 = vsel %vm691, %v678, %v684
        %v698 = vsel %vm691, %v668, %v674
        %v699 = vsel %vm691, %v670, %v676
        %v700 = vsel %vm691, %v672, %v678
        %v701 = vsel %vm691, %v686, %v668
        %v702 = vsel %vm691, %v688, %v670
        %v703 = vsel %vm691, %v690, %v672
        %704 = vset.pattern.permute.xlu0 1
        %705 = vperm.xlu0 %704, %v637
        %v706 = vpop.permute.xlu0 %705
        %708 = vset.pattern.permute.xlu0 1
        %709 = vperm.xlu0 %708, %v638
        %v710 = vpop.permute.xlu0 %709
        %712 = vset.pattern.permute.xlu0 1
        %713 = vperm.xlu0 %712, %v639
        %v714 = vpop.permute.xlu0 %713
        %v716 = vmul.f32 %v701, %v706
        %v717 = vmul.f32 %v698, %v706
        %v718 = vmul.f32 %v695, %v706
        %v719 = vmul.f32 %v692, %v706
        %v720 = vmul.f32 %v702, %v710
        %v721 = vmul.f32 %v699, %v710
        %v722 = vmul.f32 %v696, %v710
        %v723 = vmul.f32 %v693, %v710
        %v724 = vmul.f32 %v703, %v714
        %v725 = vmul.f32 %v700, %v714
        %v726 = vmul.f32 %v697, %v714
        %v727 = vmul.f32 %v694, %v714
        %v728 = vadd.f32 %v655, %v716
        %v729 = vadd.f32 %v656, %v717
        %v730 = vadd.f32 %v657, %v718
        %v731 = vadd.f32 %v658, %v719
        %v732 = vadd.f32 %v659, %v720
        %v733 = vadd.f32 %v660, %v721
        %v734 = vadd.f32 %v661, %v722
        %v735 = vadd.f32 %v662, %v723
        %v736 = vadd.f32 %v663, %v724
        %v737 = vadd.f32 %v664, %v725
        %v738 = vadd.f32 %v665, %v726
        %v739 = vadd.f32 %v666, %v727
        %740 = vrot.lane.b32.xlu0 %v586, 15
        %v741 = vpop.permute.xlu0 %740
        %742 = vrot.lane.b32.xlu0 %v590, 15
        %v743 = vpop.permute.xlu0 %742
        %744 = vrot.lane.b32.xlu0 %v594, 15
        %v745 = vpop.permute.xlu0 %744
        %746 = vrot.lane.b32.xlu0 %v587, 15
        %v747 = vpop.permute.xlu0 %746
        %748 = vrot.lane.b32.xlu0 %v591, 15
        %v749 = vpop.permute.xlu0 %748
        %750 = vrot.lane.b32.xlu0 %v595, 15
        %v751 = vpop.permute.xlu0 %750
        %752 = vrot.lane.b32.xlu0 %v588, 15
        %v753 = vpop.permute.xlu0 %752
        %754 = vrot.lane.b32.xlu0 %v592, 15
        %v755 = vpop.permute.xlu0 %754
        %756 = vrot.lane.b32.xlu0 %v596, 15
        %v757 = vpop.permute.xlu0 %756
        %758 = vrot.lane.b32.xlu0 %v589, 15
        %v759 = vpop.permute.xlu0 %758
        %760 = vrot.lane.b32.xlu0 %v593, 15
        %v761 = vpop.permute.xlu0 %760
        %762 = vrot.lane.b32.xlu0 %v597, 15
        %v763 = vpop.permute.xlu0 %762
        %vm764 = vcmp.lt.s32.totalorder %v623, 15
        %v765 = vsel %vm764, %v753, %v759
        %v766 = vsel %vm764, %v755, %v761
        %v767 = vsel %vm764, %v757, %v763
        %v768 = vsel %vm764, %v747, %v753
        %v769 = vsel %vm764, %v749, %v755
        %v770 = vsel %vm764, %v751, %v757
        %v771 = vsel %vm764, %v741, %v747
        %v772 = vsel %vm764, %v743, %v749
        %v773 = vsel %vm764, %v745, %v751
        %v774 = vsel %vm764, %v759, %v741
        %v775 = vsel %vm764, %v761, %v743
        %v776 = vsel %vm764, %v763, %v745
        %777 = vset.pattern.permute.xlu0 2
        %778 = vperm.xlu0 %777, %v637
        %v779 = vpop.permute.xlu0 %778
        %781 = vset.pattern.permute.xlu0 2
        %782 = vperm.xlu0 %781, %v638
        %v783 = vpop.permute.xlu0 %782
        %785 = vset.pattern.permute.xlu0 2
        %786 = vperm.xlu0 %785, %v639
        %v787 = vpop.permute.xlu0 %786
        %v789 = vmul.f32 %v774, %v779
        %v790 = vmul.f32 %v771, %v779
        %v791 = vmul.f32 %v768, %v779
        %v792 = vmul.f32 %v765, %v779
        %v793 = vmul.f32 %v775, %v783
        %v794 = vmul.f32 %v772, %v783
        %v795 = vmul.f32 %v769, %v783
        %v796 = vmul.f32 %v766, %v783
        %v797 = vmul.f32 %v776, %v787
        %v798 = vmul.f32 %v773, %v787
        %v799 = vmul.f32 %v770, %v787
        %v800 = vmul.f32 %v767, %v787
        %v801 = vadd.f32 %v728, %v789
        %v802 = vadd.f32 %v729, %v790
        %v803 = vadd.f32 %v730, %v791
        %v804 = vadd.f32 %v731, %v792
        %v805 = vadd.f32 %v732, %v793
        %v806 = vadd.f32 %v733, %v794
        %v807 = vadd.f32 %v734, %v795
        %v808 = vadd.f32 %v735, %v796
        %v809 = vadd.f32 %v736, %v797
        %v810 = vadd.f32 %v737, %v798
        %v811 = vadd.f32 %v738, %v799
        %v812 = vadd.f32 %v739, %v800
        %s813 = scalar_lea.vmem %s5, 2
        %v814 = vld [vmem:[%s813] ss:$4 sm:$0xf]
        %v816 = vlaneseq
        %v817 = vshrl.u32 %v816, 7
        %v818 = vsub.s32 0, %v817
        %v819 = vrot.slane %v814, %v818
        %v820 = vlaneseq
        %v821 = vshrl.u32 %v820, 7
        %v822 = vsub.s32 1, %v821
        %v823 = vrot.slane %v814, %v822
        %v824 = vlaneseq
        %v825 = vshrl.u32 %v824, 7
        %v826 = vsub.s32 2, %v825
        %v827 = vrot.slane %v814, %v826
        %v828 = vlaneseq
        %v829 = vshrl.u32 %v828, 7
        %v830 = vsub.s32 3, %v829
        %v831 = vrot.slane %v814, %v830
        %v836 = vmul.f32 %v801, %v819
        %v837 = vmul.f32 %v802, %v823
        %v838 = vmul.f32 %v803, %v827
        %v839 = vmul.f32 %v804, %v831
        %v840 = vmul.f32 %v805, %v819
        %v841 = vmul.f32 %v806, %v823
        %v842 = vmul.f32 %v807, %v827
        %v843 = vmul.f32 %v808, %v831
        %v844 = vmul.f32 %v809, %v819
        %v845 = vmul.f32 %v810, %v823
        %v846 = vmul.f32 %v811, %v827
        %v847 = vmul.f32 %v812, %v831
        %848 = vrot.lane.b32.xlu0 %v551, 1
        %v849 = vpop.permute.xlu0 %848
        %850 = vrot.lane.b32.xlu0 %v555, 1
        %v851 = vpop.permute.xlu0 %850
        %852 = vrot.lane.b32.xlu0 %v559, 1
        %v853 = vpop.permute.xlu0 %852
        %854 = vrot.lane.b32.xlu0 %v552, 1
        %v855 = vpop.permute.xlu0 %854
        %856 = vrot.lane.b32.xlu0 %v556, 1
        %v857 = vpop.permute.xlu0 %856
        %858 = vrot.lane.b32.xlu0 %v560, 1
        %v859 = vpop.permute.xlu0 %858
        %860 = vrot.lane.b32.xlu0 %v553, 1
        %v861 = vpop.permute.xlu0 %860
        %862 = vrot.lane.b32.xlu0 %v557, 1
        %v863 = vpop.permute.xlu0 %862
        %864 = vrot.lane.b32.xlu0 %v561, 1
        %v865 = vpop.permute.xlu0 %864
        %866 = vrot.lane.b32.xlu0 %v554, 1
        %v867 = vpop.permute.xlu0 %866
        %868 = vrot.lane.b32.xlu0 %v558, 1
        %v869 = vpop.permute.xlu0 %868
        %870 = vrot.lane.b32.xlu0 %v562, 1
        %v871 = vpop.permute.xlu0 %870
        %vm872 = vcmp.lt.s32.totalorder %v623, 1
        %v873 = vsel %vm872, %v861, %v867
        %v874 = vsel %vm872, %v863, %v869
        %v875 = vsel %vm872, %v865, %v871
        %v876 = vsel %vm872, %v855, %v861
        %v877 = vsel %vm872, %v857, %v863
        %v878 = vsel %vm872, %v859, %v865
        %v879 = vsel %vm872, %v849, %v855
        %v880 = vsel %vm872, %v851, %v857
        %v881 = vsel %vm872, %v853, %v859
        %v882 = vsel %vm872, %v867, %v849
        %v883 = vsel %vm872, %v869, %v851
        %v884 = vsel %vm872, %v871, %v853
        %885 = vset.pattern.permute.xlu0 3
        %886 = vperm.xlu0 %885, %v637
        %v887 = vpop.permute.xlu0 %886
        %889 = vset.pattern.permute.xlu0 3
        %890 = vperm.xlu0 %889, %v638
        %v891 = vpop.permute.xlu0 %890
        %893 = vset.pattern.permute.xlu0 3
        %894 = vperm.xlu0 %893, %v639
        %v895 = vpop.permute.xlu0 %894
        %v897 = vmul.f32 %v882, %v887
        %v898 = vmul.f32 %v879, %v887
        %v899 = vmul.f32 %v876, %v887
        %v900 = vmul.f32 %v873, %v887
        %v901 = vmul.f32 %v883, %v891
        %v902 = vmul.f32 %v880, %v891
        %v903 = vmul.f32 %v877, %v891
        %v904 = vmul.f32 %v874, %v891
        %v905 = vmul.f32 %v884, %v895
        %v906 = vmul.f32 %v881, %v895
        %v907 = vmul.f32 %v878, %v895
        %v908 = vmul.f32 %v875, %v895
        %909 = vset.pattern.permute.xlu0 4
        %910 = vperm.xlu0 %909, %v637
        %v911 = vpop.permute.xlu0 %910
        %913 = vset.pattern.permute.xlu0 4
        %914 = vperm.xlu0 %913, %v638
        %v915 = vpop.permute.xlu0 %914
        %917 = vset.pattern.permute.xlu0 4
        %918 = vperm.xlu0 %917, %v639
        %v919 = vpop.permute.xlu0 %918
        %v921 = vmul.f32 %v517, %v911
        %v922 = vmul.f32 %v518, %v911
        %v923 = vmul.f32 %v519, %v911
        %v924 = vmul.f32 %v520, %v911
        %v925 = vmul.f32 %v521, %v915
        %v926 = vmul.f32 %v522, %v915
        %v927 = vmul.f32 %v523, %v915
        %v928 = vmul.f32 %v524, %v915
        %v929 = vmul.f32 %v525, %v919
        %v930 = vmul.f32 %v526, %v919
        %v931 = vmul.f32 %v527, %v919
        %v932 = vmul.f32 %v528, %v919
        %v933 = vadd.f32 %v897, %v921
        %v934 = vadd.f32 %v898, %v922
        %v935 = vadd.f32 %v899, %v923
        %v936 = vadd.f32 %v900, %v924
        %v937 = vadd.f32 %v901, %v925
        %v938 = vadd.f32 %v902, %v926
        %v939 = vadd.f32 %v903, %v927
        %v940 = vadd.f32 %v904, %v928
        %v941 = vadd.f32 %v905, %v929
        %v942 = vadd.f32 %v906, %v930
        %v943 = vadd.f32 %v907, %v931
        %v944 = vadd.f32 %v908, %v932
        %945 = vrot.lane.b32.xlu0 %v586, 127
        %v946 = vpop.permute.xlu0 %945
        %947 = vrot.lane.b32.xlu0 %v590, 127
        %v948 = vpop.permute.xlu0 %947
        %949 = vrot.lane.b32.xlu0 %v594, 127
        %v950 = vpop.permute.xlu0 %949
        %951 = vrot.lane.b32.xlu0 %v587, 127
        %v952 = vpop.permute.xlu0 %951
        %953 = vrot.lane.b32.xlu0 %v591, 127
        %v954 = vpop.permute.xlu0 %953
        %955 = vrot.lane.b32.xlu0 %v595, 127
        %v956 = vpop.permute.xlu0 %955
        %957 = vrot.lane.b32.xlu0 %v588, 127
        %v958 = vpop.permute.xlu0 %957
        %959 = vrot.lane.b32.xlu0 %v592, 127
        %v960 = vpop.permute.xlu0 %959
        %961 = vrot.lane.b32.xlu0 %v596, 127
        %v962 = vpop.permute.xlu0 %961
        %963 = vrot.lane.b32.xlu0 %v589, 127
        %v964 = vpop.permute.xlu0 %963
        %965 = vrot.lane.b32.xlu0 %v593, 127
        %v966 = vpop.permute.xlu0 %965
        %967 = vrot.lane.b32.xlu0 %v597, 127
        %v968 = vpop.permute.xlu0 %967
        %vm969 = vcmp.lt.s32.totalorder %v623, 127
        %v970 = vsel %vm969, %v958, %v964
        %v971 = vsel %vm969, %v960, %v966
        %v972 = vsel %vm969, %v962, %v968
        %v973 = vsel %vm969, %v952, %v958
        %v974 = vsel %vm969, %v954, %v960
        %v975 = vsel %vm969, %v956, %v962
        %v976 = vsel %vm969, %v946, %v952
        %v977 = vsel %vm969, %v948, %v954
        %v978 = vsel %vm969, %v950, %v956
        %v979 = vsel %vm969, %v964, %v946
        %v980 = vsel %vm969, %v966, %v948
        %v981 = vsel %vm969, %v968, %v950
        %982 = vset.pattern.permute.xlu0 5
        %983 = vperm.xlu0 %982, %v637
        %v984 = vpop.permute.xlu0 %983
        %986 = vset.pattern.permute.xlu0 5
        %987 = vperm.xlu0 %986, %v638
        %v988 = vpop.permute.xlu0 %987
        %990 = vset.pattern.permute.xlu0 5
        %991 = vperm.xlu0 %990, %v639
        %v992 = vpop.permute.xlu0 %991
        %v994 = vmul.f32 %v976, %v984
        %v995 = vmul.f32 %v973, %v984
        %v996 = vmul.f32 %v970, %v984
        %v997 = vmul.f32 %v979, %v984
        %v998 = vmul.f32 %v977, %v988
        %v999 = vmul.f32 %v974, %v988
        %v1000 = vmul.f32 %v971, %v988
        %v1001 = vmul.f32 %v980, %v988
        %v1002 = vmul.f32 %v978, %v992
        %v1003 = vmul.f32 %v975, %v992
        %v1004 = vmul.f32 %v972, %v992
        %v1005 = vmul.f32 %v981, %v992
        %v1006 = vadd.f32 %v933, %v994
        %v1007 = vadd.f32 %v934, %v995
        %v1008 = vadd.f32 %v935, %v996
        %v1009 = vadd.f32 %v936, %v997
        %v1010 = vadd.f32 %v937, %v998
        %v1011 = vadd.f32 %v938, %v999
        %v1012 = vadd.f32 %v939, %v1000
        %v1013 = vadd.f32 %v940, %v1001
        %v1014 = vadd.f32 %v941, %v1002
        %v1015 = vadd.f32 %v942, %v1003
        %v1016 = vadd.f32 %v943, %v1004
        %v1017 = vadd.f32 %v944, %v1005
        %v1018 = vadd.f32 %v836, %v1006
        %v1019 = vadd.f32 %v837, %v1007
        %v1020 = vadd.f32 %v838, %v1008
        %v1021 = vadd.f32 %v839, %v1009
        %v1022 = vadd.f32 %v840, %v1010
        %v1023 = vadd.f32 %v841, %v1011
        %v1024 = vadd.f32 %v842, %v1012
        %v1025 = vadd.f32 %v843, %v1013
        %v1026 = vadd.f32 %v844, %v1014
        %v1027 = vadd.f32 %v845, %v1015
        %v1028 = vadd.f32 %v846, %v1016
        %v1029 = vadd.f32 %v847, %v1017
        %1030 = vrot.lane.b32.xlu0 %v551, 113
        %v1031 = vpop.permute.xlu0 %1030
        %1032 = vrot.lane.b32.xlu0 %v555, 113
        %v1033 = vpop.permute.xlu0 %1032
        %1034 = vrot.lane.b32.xlu0 %v559, 113
        %v1035 = vpop.permute.xlu0 %1034
        %1036 = vrot.lane.b32.xlu0 %v552, 113
        %v1037 = vpop.permute.xlu0 %1036
        %1038 = vrot.lane.b32.xlu0 %v556, 113
        %v1039 = vpop.permute.xlu0 %1038
        %1040 = vrot.lane.b32.xlu0 %v560, 113
        %v1041 = vpop.permute.xlu0 %1040
        %1042 = vrot.lane.b32.xlu0 %v553, 113
        %v1043 = vpop.permute.xlu0 %1042
        %1044 = vrot.lane.b32.xlu0 %v557, 113
        %v1045 = vpop.permute.xlu0 %1044
        %1046 = vrot.lane.b32.xlu0 %v561, 113
        %v1047 = vpop.permute.xlu0 %1046
        %1048 = vrot.lane.b32.xlu0 %v554, 113
        %v1049 = vpop.permute.xlu0 %1048
        %1050 = vrot.lane.b32.xlu0 %v558, 113
        %v1051 = vpop.permute.xlu0 %1050
        %1052 = vrot.lane.b32.xlu0 %v562, 113
        %v1053 = vpop.permute.xlu0 %1052
        %vm1054 = vcmp.lt.s32.totalorder %v623, 113
        %v1055 = vsel %vm1054, %v1043, %v1049
        %v1056 = vsel %vm1054, %v1045, %v1051
        %v1057 = vsel %vm1054, %v1047, %v1053
        %v1058 = vsel %vm1054, %v1037, %v1043
        %v1059 = vsel %vm1054, %v1039, %v1045
        %v1060 = vsel %vm1054, %v1041, %v1047
        %v1061 = vsel %vm1054, %v1031, %v1037
        %v1062 = vsel %vm1054, %v1033, %v1039
        %v1063 = vsel %vm1054, %v1035, %v1041
        %v1064 = vsel %vm1054, %v1049, %v1031
        %v1065 = vsel %vm1054, %v1051, %v1033
        %v1066 = vsel %vm1054, %v1053, %v1035
        %1067 = vset.pattern.permute.xlu0 6
        %1068 = vperm.xlu0 %1067, %v637
        %v1069 = vpop.permute.xlu0 %1068
        %1071 = vset.pattern.permute.xlu0 6
        %1072 = vperm.xlu0 %1071, %v638
        %v1073 = vpop.permute.xlu0 %1072
        %1075 = vset.pattern.permute.xlu0 6
        %1076 = vperm.xlu0 %1075, %v639
        %v1077 = vpop.permute.xlu0 %1076
        %v1079 = vmul.f32 %v1061, %v1069
        %v1080 = vmul.f32 %v1058, %v1069
        %v1081 = vmul.f32 %v1055, %v1069
        %v1082 = vmul.f32 %v1064, %v1069
        %v1083 = vmul.f32 %v1062, %v1073
        %v1084 = vmul.f32 %v1059, %v1073
        %v1085 = vmul.f32 %v1056, %v1073
        %v1086 = vmul.f32 %v1065, %v1073
        %v1087 = vmul.f32 %v1063, %v1077
        %v1088 = vmul.f32 %v1060, %v1077
        %v1089 = vmul.f32 %v1057, %v1077
        %v1090 = vmul.f32 %v1066, %v1077
        %1091 = vrot.lane.b32.xlu0 %v517, 112
        %v1092 = vpop.permute.xlu0 %1091
        %1093 = vrot.lane.b32.xlu0 %v521, 112
        %v1094 = vpop.permute.xlu0 %1093
        %1095 = vrot.lane.b32.xlu0 %v525, 112
        %v1096 = vpop.permute.xlu0 %1095
        %1097 = vrot.lane.b32.xlu0 %v518, 112
        %v1098 = vpop.permute.xlu0 %1097
        %1099 = vrot.lane.b32.xlu0 %v522, 112
        %v1100 = vpop.permute.xlu0 %1099
        %1101 = vrot.lane.b32.xlu0 %v526, 112
        %v1102 = vpop.permute.xlu0 %1101
        %1103 = vrot.lane.b32.xlu0 %v519, 112
        %v1104 = vpop.permute.xlu0 %1103
        %1105 = vrot.lane.b32.xlu0 %v523, 112
        %v1106 = vpop.permute.xlu0 %1105
        %1107 = vrot.lane.b32.xlu0 %v527, 112
        %v1108 = vpop.permute.xlu0 %1107
        %1109 = vrot.lane.b32.xlu0 %v520, 112
        %v1110 = vpop.permute.xlu0 %1109
        %1111 = vrot.lane.b32.xlu0 %v524, 112
        %v1112 = vpop.permute.xlu0 %1111
        %1113 = vrot.lane.b32.xlu0 %v528, 112
        %v1114 = vpop.permute.xlu0 %1113
        %vm1115 = vcmp.lt.s32.totalorder %v623, 112
        %v1116 = vsel %vm1115, %v1104, %v1110
        %v1117 = vsel %vm1115, %v1106, %v1112
        %v1118 = vsel %vm1115, %v1108, %v1114
        %v1119 = vsel %vm1115, %v1098, %v1104
        %v1120 = vsel %vm1115, %v1100, %v1106
        %v1121 = vsel %vm1115, %v1102, %v1108
        %v1122 = vsel %vm1115, %v1092, %v1098
        %v1123 = vsel %vm1115, %v1094, %v1100
        %v1124 = vsel %vm1115, %v1096, %v1102
        %v1125 = vsel %vm1115, %v1110, %v1092
        %v1126 = vsel %vm1115, %v1112, %v1094
        %v1127 = vsel %vm1115, %v1114, %v1096
        %1128 = vset.pattern.permute.xlu0 7
        %1129 = vperm.xlu0 %1128, %v637
        %v1130 = vpop.permute.xlu0 %1129
        %1132 = vset.pattern.permute.xlu0 7
        %1133 = vperm.xlu0 %1132, %v638
        %v1134 = vpop.permute.xlu0 %1133
        %1136 = vset.pattern.permute.xlu0 7
        %1137 = vperm.xlu0 %1136, %v639
        %v1138 = vpop.permute.xlu0 %1137
        %v1140 = vmul.f32 %v1122, %v1130
        %v1141 = vmul.f32 %v1119, %v1130
        %v1142 = vmul.f32 %v1116, %v1130
        %v1143 = vmul.f32 %v1125, %v1130
        %v1144 = vmul.f32 %v1123, %v1134
        %v1145 = vmul.f32 %v1120, %v1134
        %v1146 = vmul.f32 %v1117, %v1134
        %v1147 = vmul.f32 %v1126, %v1134
        %v1148 = vmul.f32 %v1124, %v1138
        %v1149 = vmul.f32 %v1121, %v1138
        %v1150 = vmul.f32 %v1118, %v1138
        %v1151 = vmul.f32 %v1127, %v1138
        %v1152 = vadd.f32 %v1079, %v1140
        %v1153 = vadd.f32 %v1080, %v1141
        %v1154 = vadd.f32 %v1081, %v1142
        %v1155 = vadd.f32 %v1082, %v1143
        %v1156 = vadd.f32 %v1083, %v1144
        %v1157 = vadd.f32 %v1084, %v1145
        %v1158 = vadd.f32 %v1085, %v1146
        %v1159 = vadd.f32 %v1086, %v1147
        %v1160 = vadd.f32 %v1087, %v1148
        %v1161 = vadd.f32 %v1088, %v1149
        %v1162 = vadd.f32 %v1089, %v1150
        %v1163 = vadd.f32 %v1090, %v1151
        %1164 = vrot.lane.b32.xlu0 %v586, 111
        %v1165 = vpop.permute.xlu0 %1164
        %1166 = vrot.lane.b32.xlu0 %v590, 111
        %v1167 = vpop.permute.xlu0 %1166
        %1168 = vrot.lane.b32.xlu0 %v594, 111
        %v1169 = vpop.permute.xlu0 %1168
        %1170 = vrot.lane.b32.xlu0 %v587, 111
        %v1171 = vpop.permute.xlu0 %1170
        %1172 = vrot.lane.b32.xlu0 %v591, 111
        %v1173 = vpop.permute.xlu0 %1172
        %1174 = vrot.lane.b32.xlu0 %v595, 111
        %v1175 = vpop.permute.xlu0 %1174
        %1176 = vrot.lane.b32.xlu0 %v588, 111
        %v1177 = vpop.permute.xlu0 %1176
        %1178 = vrot.lane.b32.xlu0 %v592, 111
        %v1179 = vpop.permute.xlu0 %1178
        %1180 = vrot.lane.b32.xlu0 %v596, 111
        %v1181 = vpop.permute.xlu0 %1180
        %1182 = vrot.lane.b32.xlu0 %v589, 111
        %v1183 = vpop.permute.xlu0 %1182
        %1184 = vrot.lane.b32.xlu0 %v593, 111
        %v1185 = vpop.permute.xlu0 %1184
        %1186 = vrot.lane.b32.xlu0 %v597, 111
        %v1187 = vpop.permute.xlu0 %1186
        %vm1188 = vcmp.lt.s32.totalorder %v623, 111
        %v1189 = vsel %vm1188, %v1177, %v1183
        %v1190 = vsel %vm1188, %v1179, %v1185
        %v1191 = vsel %vm1188, %v1181, %v1187
        %v1192 = vsel %vm1188, %v1171, %v1177
        %v1193 = vsel %vm1188, %v1173, %v1179
        %v1194 = vsel %vm1188, %v1175, %v1181
        %v1195 = vsel %vm1188, %v1165, %v1171
        %v1196 = vsel %vm1188, %v1167, %v1173
        %v1197 = vsel %vm1188, %v1169, %v1175
        %v1198 = vsel %vm1188, %v1183, %v1165
        %v1199 = vsel %vm1188, %v1185, %v1167
        %v1200 = vsel %vm1188, %v1187, %v1169
        %1201 = vset.pattern.permute.xlu0 8
        %1202 = vperm.xlu0 %1201, %v637
        %v1203 = vpop.permute.xlu0 %1202
        %1205 = vset.pattern.permute.xlu0 8
        %1206 = vperm.xlu0 %1205, %v638
        %v1207 = vpop.permute.xlu0 %1206
        %1209 = vset.pattern.permute.xlu0 8
        %1210 = vperm.xlu0 %1209, %v639
        %v1211 = vpop.permute.xlu0 %1210
        %v1213 = vmul.f32 %v1195, %v1203
        %v1214 = vmul.f32 %v1192, %v1203
        %v1215 = vmul.f32 %v1189, %v1203
        %v1216 = vmul.f32 %v1198, %v1203
        %v1217 = vmul.f32 %v1196, %v1207
        %v1218 = vmul.f32 %v1193, %v1207
        %v1219 = vmul.f32 %v1190, %v1207
        %v1220 = vmul.f32 %v1199, %v1207
        %v1221 = vmul.f32 %v1197, %v1211
        %v1222 = vmul.f32 %v1194, %v1211
        %v1223 = vmul.f32 %v1191, %v1211
        %v1224 = vmul.f32 %v1200, %v1211
        %v1225 = vadd.f32 %v1152, %v1213
        %v1226 = vadd.f32 %v1153, %v1214
        %v1227 = vadd.f32 %v1154, %v1215
        %v1228 = vadd.f32 %v1155, %v1216
        %v1229 = vadd.f32 %v1156, %v1217
        %v1230 = vadd.f32 %v1157, %v1218
        %v1231 = vadd.f32 %v1158, %v1219
        %v1232 = vadd.f32 %v1159, %v1220
        %v1233 = vadd.f32 %v1160, %v1221
        %v1234 = vadd.f32 %v1161, %v1222
        %v1235 = vadd.f32 %v1162, %v1223
        %v1236 = vadd.f32 %v1163, %v1224
        %s1237 = scalar_lea.vmem %s5, 3
        %v1238 = vld [vmem:[%s1237] ss:$4 sm:$0xf]
        %v1240 = vlaneseq
        %v1241 = vshrl.u32 %v1240, 7
        %v1242 = vsub.s32 0, %v1241
        %v1243 = vrot.slane %v1238, %v1242
        %v1244 = vlaneseq
        %v1245 = vshrl.u32 %v1244, 7
        %v1246 = vsub.s32 1, %v1245
        %v1247 = vrot.slane %v1238, %v1246
        %v1248 = vlaneseq
        %v1249 = vshrl.u32 %v1248, 7
        %v1250 = vsub.s32 2, %v1249
        %v1251 = vrot.slane %v1238, %v1250
        %v1252 = vlaneseq
        %v1253 = vshrl.u32 %v1252, 7
        %v1254 = vsub.s32 3, %v1253
        %v1255 = vrot.slane %v1238, %v1254
        %v1260 = vmul.f32 %v1225, %v1243
        %v1261 = vmul.f32 %v1226, %v1247
        %v1262 = vmul.f32 %v1227, %v1251
        %v1263 = vmul.f32 %v1228, %v1255
        %v1264 = vmul.f32 %v1229, %v1243
        %v1265 = vmul.f32 %v1230, %v1247
        %v1266 = vmul.f32 %v1231, %v1251
        %v1267 = vmul.f32 %v1232, %v1255
        %v1268 = vmul.f32 %v1233, %v1243
        %v1269 = vmul.f32 %v1234, %v1247
        %v1270 = vmul.f32 %v1235, %v1251
        %v1271 = vmul.f32 %v1236, %v1255
        %v1272 = vadd.f32 %v1018, %v1260
        %v1273 = vadd.f32 %v1019, %v1261
        %v1274 = vadd.f32 %v1020, %v1262
        %v1275 = vadd.f32 %v1021, %v1263
        %v1276 = vadd.f32 %v1022, %v1264
        %v1277 = vadd.f32 %v1023, %v1265
        %v1278 = vadd.f32 %v1024, %v1266
        %v1279 = vadd.f32 %v1025, %v1267
        %v1280 = vadd.f32 %v1026, %v1268
        %v1281 = vadd.f32 %v1027, %v1269
        %v1282 = vadd.f32 %v1028, %v1270
        %v1283 = vadd.f32 %v1029, %v1271
        %v1284 = vld [vmem:[%s4] sm:$0xff]
        %v1285 = vld [vmem:[%s4 + $0x8] sm:$0xff]
        %v1286 = vld [vmem:[%s4 + $0x10] sm:$0xff]
        %1288 = vset.pattern.permute.xlu0 0
        %1289 = vperm.xlu0 %1288, %v1284
        %v1290 = vpop.permute.xlu0 %1289
        %1293 = vset.pattern.permute.xlu0 0
        %1294 = vperm.xlu0 %1293, %v1285
        %v1295 = vpop.permute.xlu0 %1294
        %1298 = vset.pattern.permute.xlu0 0
        %1299 = vperm.xlu0 %1298, %v1286
        %v1300 = vpop.permute.xlu0 %1299
        %v1302 = vadd.f32 %v1272, %v1290
        %v1303 = vadd.f32 %v1273, %v1290
        %v1304 = vadd.f32 %v1274, %v1290
        %v1305 = vadd.f32 %v1275, %v1290
        %v1306 = vadd.f32 %v1276, %v1295
        %v1307 = vadd.f32 %v1277, %v1295
        %v1308 = vadd.f32 %v1278, %v1295
        %v1309 = vadd.f32 %v1279, %v1295
        %v1310 = vadd.f32 %v1280, %v1300
        %v1311 = vadd.f32 %v1281, %v1300
        %v1312 = vadd.f32 %v1282, %v1300
        %v1313 = vadd.f32 %v1283, %v1300
        %v1314 = vmax.f32 %v1302, 0.0
        %v1315 = vmax.f32 %v1303, 0.0
        %v1316 = vmax.f32 %v1304, 0.0
        %v1317 = vmax.f32 %v1305, 0.0
        %v1318 = vmax.f32 %v1306, 0.0
        %v1319 = vmax.f32 %v1307, 0.0
        %v1320 = vmax.f32 %v1308, 0.0
        %v1321 = vmax.f32 %v1309, 0.0
        %v1322 = vmax.f32 %v1310, 0.0
        %v1323 = vmax.f32 %v1311, 0.0
        %v1324 = vmax.f32 %v1312, 0.0
        %v1325 = vmax.f32 %v1313, 0.0
        %v1326 = vmin.f32 %v1314, 6.0
        %v1327 = vmin.f32 %v1315, 6.0
        %v1328 = vmin.f32 %v1316, 6.0
        %v1329 = vmin.f32 %v1317, 6.0
        %v1330 = vmin.f32 %v1318, 6.0
        %v1331 = vmin.f32 %v1319, 6.0
        %v1332 = vmin.f32 %v1320, 6.0
        %v1333 = vmin.f32 %v1321, 6.0
        %v1334 = vmin.f32 %v1322, 6.0
        %v1335 = vmin.f32 %v1323, 6.0
        %v1336 = vmin.f32 %v1324, 6.0
        %v1337 = vmin.f32 %v1325, 6.0
        %v1338 = vld [vmem:[%s6] sm:$0xff]
        %v1339 = vld [vmem:[%s7] sm:$0xff]
        %1341 = vset.pattern.permute.xlu0 0
        %1342 = vperm.xlu0 %1341, %v1339
        %v1343 = vpop.permute.xlu0 %1342
        %vm1345 = vcmask 195584
        %v1347 = vsel %vm1345, %v1338, 0
        %1349 = vmatprep.subr.mxu0 %v1327
        %1350 = vmatpush1.msra.mxu0 %v1326
        %1351 = vmatprep.subr.mxu0 %v1331
        %1352 = vmatpush1.msra.mxu0 %v1330
        %1353 = vmatprep.subr.mxu0 %v1335
        %1354 = vmatpush1.msra.mxu0 %v1334
        %1355 = vmatprep.subr.mxu0 0.0
        %1356 = vmatpush1.msra.mxu0 0.0
        %1357 = vmatprep.subr.mxu0 0.0
        %1358 = vmatpush1.msra.mxu0 0.0
        %1359 = vmatprep.subr.mxu0 0.0
        %1360 = vmatpush1.msra.mxu0 0.0
        %1361 = vmatprep.subr.mxu0 0.0
        %1362 = vmatpush1.msra.mxu0 0.0
        %1363 = vmatprep.subr.mxu0 0.0
        %1364 = vmatpush1.msra.mxu0 0.0
        %1365 = vmatprep.subr.mxu0 0.0
        %1366 = vmatpush1.msra.mxu0 0.0
        %1367 = vmatprep.subr.mxu0 0.0
        %1368 = vmatpush1.msra.mxu0 0.0
        %1369 = vmatprep.subr.mxu0 0.0
        %1370 = vmatpush1.msra.mxu0 0.0
        %1371 = vmatprep.subr.mxu0 0.0
        %1372 = vmatpush1.msra.mxu0 0.0
        %1373 = vmatprep.subr.mxu0 0.0
        %1374 = vmatpush1.msra.mxu0 0.0
        %1375 = vmatprep.subr.mxu0 0.0
        %1376 = vmatpush1.msra.mxu0 0.0
        %1377 = vmatprep.subr.mxu0 0.0
        %1378 = vmatpush1.msra.mxu0 0.0
        %1379 = vmatprep.subr.mxu0 0.0
        %1380 = vmatpush1.msra.mxu0 0.0
        %1381 = vmatprep.subr.mxu0 0.0
        %1382 = vmatpush1.msra.mxu0 0.0
        %1383 = vmatprep.subr.mxu0 0.0
        %1384 = vmatpush1.msra.mxu0 0.0
        %1385 = vmatprep.subr.mxu0 0.0
        %1386 = vmatpush1.msra.mxu0 0.0
        %1387 = vmatprep.subr.mxu0 0.0
        %1388 = vmatpush1.msra.mxu0 0.0
        %1389 = vmatprep.subr.mxu0 0.0
        %1390 = vmatpush1.msra.mxu0 0.0
        %1391 = vmatprep.subr.mxu0 0.0
        %1392 = vmatpush1.msra.mxu0 0.0
        %1393 = vmatprep.subr.mxu0 0.0
        %1394 = vmatpush1.msra.mxu0 0.0
        %1395 = vmatprep.subr.mxu0 0.0
        %1396 = vmatpush1.msra.mxu0 0.0
        %1397 = vmatprep.subr.mxu0 0.0
        %1398 = vmatpush1.msra.mxu0 0.0
        %1399 = vmatprep.subr.mxu0 0.0
        %1400 = vmatpush1.msra.mxu0 0.0
        %1401 = vmatprep.subr.mxu0 0.0
        %1402 = vmatpush1.msra.mxu0 0.0
        %1403 = vmatprep.subr.mxu0 0.0
        %1404 = vmatpush1.msra.mxu0 0.0
        %1405 = vmatprep.subr.mxu0 0.0
        %1406 = vmatpush1.msra.mxu0 0.0
        %1407 = vmatprep.subr.mxu0 0.0
        %1408 = vmatpush1.msra.mxu0 0.0
        %1409 = vmatprep.subr.mxu0 0.0
        %1410 = vmatpush1.msra.mxu0 0.0
        %1411 = vmatprep.subr.mxu0 0.0
        %1412 = vmatpush1.msra.mxu0 0.0
        %1413 = vmatprep.mubr.f32.mxu0 0.0
        %1414 = vmatmul.mubr.f32.gmra.mrb[0].mxu0 %v1347
        %v1415 = vpop.f32.mrb[0].mxu0
        %v1416 = vadd.f32 %v1343, %v1415
        %v1417 = vpop.f32.mrb[0].mxu0
        %v1418 = vadd.f32 %v1343, %v1417
        %1419 = vdwg.mxu0
        %1420 = vmatprep.subr.mxu0 %v1329
        %1421 = vmatpush1.msra.mxu0 %v1328
        %1422 = vmatprep.subr.mxu0 %v1333
        %1423 = vmatpush1.msra.mxu0 %v1332
        %1424 = vmatprep.subr.mxu0 %v1337
        %1425 = vmatpush1.msra.mxu0 %v1336
        %1426 = vmatprep.subr.mxu0 0.0
        %1427 = vmatpush1.msra.mxu0 0.0
        %1428 = vmatprep.subr.mxu0 0.0
        %1429 = vmatpush1.msra.mxu0 0.0
        %1430 = vmatprep.subr.mxu0 0.0
        %1431 = vmatpush1.msra.mxu0 0.0
        %1432 = vmatprep.subr.mxu0 0.0
        %1433 = vmatpush1.msra.mxu0 0.0
        %1434 = vmatprep.subr.mxu0 0.0
        %1435 = vmatpush1.msra.mxu0 0.0
        %1436 = vmatprep.subr.mxu0 0.0
        %1437 = vmatpush1.msra.mxu0 0.0
        %1438 = vmatprep.subr.mxu0 0.0
        %1439 = vmatpush1.msra.mxu0 0.0
        %1440 = vmatprep.subr.mxu0 0.0
        %1441 = vmatpush1.msra.mxu0 0.0
        %1442 = vmatprep.subr.mxu0 0.0
        %1443 = vmatpush1.msra.mxu0 0.0
        %1444 = vmatprep.subr.mxu0 0.0
        %1445 = vmatpush1.msra.mxu0 0.0
        %1446 = vmatprep.subr.mxu0 0.0
        %1447 = vmatpush1.msra.mxu0 0.0
        %1448 = vmatprep.subr.mxu0 0.0
        %1449 = vmatpush1.msra.mxu0 0.0
        %1450 = vmatprep.subr.mxu0 0.0
        %1451 = vmatpush1.msra.mxu0 0.0
        %1452 = vmatprep.subr.mxu0 0.0
        %1453 = vmatpush1.msra.mxu0 0.0
        %1454 = vmatprep.subr.mxu0 0.0
        %1455 = vmatpush1.msra.mxu0 0.0
        %1456 = vmatprep.subr.mxu0 0.0
        %1457 = vmatpush1.msra.mxu0 0.0
        %1458 = vmatprep.subr.mxu0 0.0
        %1459 = vmatpush1.msra.mxu0 0.0
        %1460 = vmatprep.subr.mxu0 0.0
        %1461 = vmatpush1.msra.mxu0 0.0
        %1462 = vmatprep.subr.mxu0 0.0
        %1463 = vmatpush1.msra.mxu0 0.0
        %1464 = vmatprep.subr.mxu0 0.0
        %1465 = vmatpush1.msra.mxu0 0.0
        %1466 = vmatprep.subr.mxu0 0.0
        %1467 = vmatpush1.msra.mxu0 0.0
        %1468 = vmatprep.subr.mxu0 0.0
        %1469 = vmatpush1.msra.mxu0 0.0
        %1470 = vmatprep.subr.mxu0 0.0
        %1471 = vmatpush1.msra.mxu0 0.0
        %1472 = vmatprep.subr.mxu0 0.0
        %1473 = vmatpush1.msra.mxu0 0.0
        %1474 = vmatprep.subr.mxu0 0.0
        %1475 = vmatpush1.msra.mxu0 0.0
        %1476 = vmatprep.subr.mxu0 0.0
        %1477 = vmatpush1.msra.mxu0 0.0
        %1478 = vmatprep.subr.mxu0 0.0
        %1479 = vmatpush1.msra.mxu0 0.0
        %1480 = vmatprep.subr.mxu0 0.0
        %1481 = vmatpush1.msra.mxu0 0.0
        %1482 = vmatprep.subr.mxu0 0.0
        %1483 = vmatpush1.msra.mxu0 0.0
        %1484 = vmatprep.mubr.f32.mxu0 0.0
        %1485 = vmatmul.mubr.f32.gmra.mrb[0].mxu0 %v1347
        %v1486 = vpop.f32.mrb[0].mxu0
        %v1487 = vadd.f32 %v1343, %v1486
        %v1488 = vpop.f32.mrb[0].mxu0
        %v1489 = vadd.f32 %v1343, %v1488
        %1490 = vdwg.mxu0
        %v1491 = vadd.f32 %v1416, %v304
        %v1492 = vadd.f32 %v1418, %v305
        %v1493 = vadd.f32 %v1487, %v306
        %v1494 = vadd.f32 %v1489, %v307
        %1495 = vst [vmem:[%s298] sm:$0xff] %v1491
        %1496 = vst [vmem:[%s298 + $0x8] sm:$0xff] %v1492
        %1497 = vst [vmem:[%s298 + $0x10] sm:$0xff] %v1493
        %1498 = vst [vmem:[%s298 + $0x18] sm:$0xff] %v1494
        %s1499 = sand.u32 %s203, 1
        %s1500 = scalar_lea.sflag [#allocation3], %s1499
        %s1501 = sand.u32 %s203, 1
        %s1502 = smul.addr %s1501, 32
        %s1503 = scalar_lea.vmem [#allocation2], %s1502
        // Predicated region
        $region53: #{tpu_custom_call.1} parent=51 // pred_check
          %p1504 = pneg %p213
        $region54: #{tpu_custom_call.1} parent=51 // pred_check_branch
          %1506 = sbr.rel (%p1504) target = $region56
        $region55: #{tpu_custom_call.1} parent=51 // pred_region
          %s1508 = ssub.s32 512, 512
          %1509 = vsyncadd %s1500, %s1508
          %s1510 = smul.addr %s22, 4
          %s1511 = smul.addr %s1510, 128
          %s1512 = scalar_lea.hbm %s8, %s1511
          %s1514 = sshll.u32 %s1503, 4
          %s1515 = int_to_ptr.vmem [resolvable:$true] %s1514
          %1517 = dma.vmem_to_hbm [thread:$0]  %s1515, 512, %s1512, %s1500
        $region56: #{tpu_custom_call.1} parent=51 // pred_fallthru
          _
      $region52: #{tpu_custom_call.1} parent=5 // pred_fallthru
        _
      %p1518 = scmp.le.s32.totalorder 2, %s17
      // Predicated region
      $region57: #{tpu_custom_call.1} parent=5 // pred_check
        %p1519 = pneg %p1518
      $region58: #{tpu_custom_call.1} parent=5 // pred_check_branch
        %1521 = sbr.rel (%p1519) target = $region60
      $region59: #{tpu_custom_call.1} parent=5 // pred_region
        %s1522 = ssub.s32 %s17, 2
        // Predicated region
        $region61: #{tpu_custom_call.1} parent=59 // pred_check
          %p1523 = pneg %p219
        $region62: #{tpu_custom_call.1} parent=59 // pred_check_branch
          %1525 = sbr.rel (%p1523) target = $region64
        $region63: #{tpu_custom_call.1} parent=59 // pred_region
          %s1526 = sand.u32 %s204, 1
          %s1527 = scalar_lea.sflag [#allocation3], %s1526
          %s1528 = sand.u32 %s204, 1
          %s1529 = smul.addr %s1528, 32
          %s1530 = scalar_lea.vmem [#allocation2], %s1529
          %1531 = dma.done %s1527, 512
        $region64: #{tpu_custom_call.1} parent=59 // pred_fallthru
          _
      $region60: #{tpu_custom_call.1} parent=5 // pred_fallthru
        _
    $region6: #{tpu_custom_call.1} parent=1 // loop_footer
      %s21 = sadd.s32 1, %s17
    $region7: #{tpu_custom_call.1} parent=1 // loop_footer_branch
      %16 = sbr.rel target = $region3
    $region8: #{tpu_custom_call.1} parent=1 // loop_exit
      _
    %1532 = vsyncpa [#allocation3], 1
    %s1533 = scalar_lea.sflag [#allocation3], 1
    %1534 = vsyncpa %s1533, 1

</llo_original>
